<compile_context>
chip_gen: v7x
topology: tpu7x:2x2x1
jax: 0.10.0
libtpu: 0.0.40
codegen_flags: <defaults>
</compile_context>

<pallas_src>
import functools

import jax
import jax.numpy as jnp
import numpy as np
from jax.experimental import pallas as pl
from jax.experimental.pallas import tpu as pltpu

PADF = 128  # lane-aligned flat padding on each side of the per-image (C, H*W) slab


def spatial_fusion_kernel(x_ref, wp_ref, bp_ref, wall_ref, bf_ref, wo_ref, bo_ref,
                          out_ref, pp_ref, st_ref, *, H, W):
    T = x_ref.shape[0]
    HW = H * W
    HID = pp_ref.shape[0]
    pad = (pp_ref.shape[1] - HW) // 2  # == PADF (static)
    offs = (-3, -2, -1, 1, 2, 3)

    # Zero the two lane-aligned border strips once per grid step; they implement the
    # 7x1 conv's vertical zero padding (|d*W| <= 48 < pad), so no vertical mask is used.
    pp_ref[:, 0:pad] = jnp.zeros((HID, pad), jnp.float32)
    pp_ref[:, pad + HW:2 * pad + HW] = jnp.zeros((HID, pad), jnp.float32)

    # Horizontal (1x7) boundary masks -- once per grid step, reused for all T images.
    w_idx = jax.lax.broadcasted_iota(jnp.int32, (1, HW), 1) % W
    mh = [(w_idx + d >= 0) & (w_idx + d < W) for d in offs]

    for t in range(T):
        # ---- proj: 1x1 conv (C_in -> hidden) + bias + ReLU, channel-major ----
        proj = jnp.dot(wp_ref[...], x_ref[t], preferred_element_type=jnp.float32)
        proj = jnp.maximum(proj + bp_ref[...], 0.0)                   # (HID, HW)

        # Stage proj into the zero-padded slab (for shifted tap reads) and into the
        # stacked-tap scratch (center block of the merged matmul).
        pp_ref[:, pad:pad + HW] = proj
        st_ref[0:HID, :] = proj
        for j, d in enumerate(offs):
            # vertical tap proj[:, h+d, w]: out-of-range rows read the zeroed pads
            st_ref[(1 + j) * HID:(2 + j) * HID, :] = \
                pp_ref[:, pad + d * W:pad + d * W + HW]
            # horizontal tap proj[:, h, w+d]: flat shift wraps rows -> mask it
            st_ref[(7 + j) * HID:(8 + j) * HID, :] = jnp.where(
                mh[j], pp_ref[:, pad + d:pad + d + HW], 0.0)

        # ---- merged 7x1 + 1x7 conv: one K = 13*HID matmul, then fusion head ----
        s = jnp.maximum(
            jnp.dot(wall_ref[...], st_ref[...], preferred_element_type=jnp.float32)
            + bf_ref[...], 0.0)
        logits = jnp.dot(wo_ref[...], s, preferred_element_type=jnp.float32) + bo_ref[...]
        out_ref[t] = (1.0 / (1.0 + jnp.exp(-logits))).astype(out_ref.dtype)


def _pick_tile(B, max_t=8):
    """Largest divisor of B (<= max_t) that still leaves >= 2 grid steps (when B >= 2)."""
    best = 1
    for t in range(1, min(B, max_t) + 1):
        if B % t == 0 and (B // t >= 2 or B == 1):
            best = t
    return best


def spatial_fusion_forward(sr_fe, seg_fe, params, *, tile=None):
    """sr_fe: (B, sr_ch, H, W), seg_fe: (B, seg_ch, H, W), float32 NCHW (like PyTorch)."""
    B, _, H, W = sr_fe.shape
    seg_ch = seg_fe.shape[1]
    HW = H * W
    assert HW % 128 == 0, "H*W must be a multiple of 128 for the lane-dense layout"
    assert 3 * W <= PADF, "flat padding must cover the +/-3 row offsets"

    # ---- layout plumbing (plain JAX): (B, C, H*W) is a free view of NCHW ----
    x = jnp.concatenate([sr_fe, seg_fe], axis=1).reshape(B, -1, HW)   # (B, Cin, HW)
    cin = x.shape[1]

    wp = params['proj_w']                                             # (HID, Cin)
    bp = params['proj_b'].reshape(-1, 1)                              # (HID, 1)
    w1, w2 = params['f1_w'], params['f2_w']                           # (HID, HID, 7)
    hid = wp.shape[0]
    assert hid % 8 == 0, "hidden_state must be a multiple of 8 (sublane alignment)"
    offs = (-3, -2, -1, 1, 2, 3)
    # Merged tap weights: [center (7x1 + 1x7) | 6 vertical taps | 6 horizontal taps]
    wall = jnp.concatenate(
        [w1[:, :, 3] + w2[:, :, 3]]
        + [w1[:, :, d + 3] for d in offs]
        + [w2[:, :, d + 3] for d in offs], axis=1)                    # (HID, 13*HID)
    bf = (params['f1_b'] + params['f2_b']).reshape(-1, 1)             # (HID, 1)
    wo = params['out_w']                                              # (seg_ch, HID)
    bo = params['out_b'].reshape(-1, 1)                               # (seg_ch, 1)

    T = tile if tile is not None else _pick_tile(B)
    assert B % T == 0

    full = lambda a: pl.BlockSpec(a.shape, lambda b: (0,) * a.ndim)
    kernel = functools.partial(spatial_fusion_kernel, H=H, W=W)
    out = pl.pallas_call(
        kernel,
        out_shape=jax.ShapeDtypeStruct((B, seg_ch, HW), jnp.float32),
        grid=(B // T,),
        in_specs=[pl.BlockSpec((T, cin, HW), lambda b: (b, 0, 0)),
                  full(wp), full(bp), full(wall), full(bf), full(wo), full(bo)],
        out_specs=pl.BlockSpec((T, seg_ch, HW), lambda b: (b, 0, 0)),
        scratch_shapes=[pltpu.VMEM((hid, 2 * PADF + HW), jnp.float32),   # padded proj
                        pltpu.VMEM((13 * hid, HW), jnp.float32)],        # stacked taps
        compiler_params=pltpu.CompilerParams(
            dimension_semantics=("parallel",)),
    )(x, wp, bp, wall, bf, wo, bo)

    # back to NCHW: (B, seg_ch, H*W) -> (B, seg_ch, H, W) -- free reshape
    return out.reshape(B, seg_ch, H, W)


def init_params(key, sr_ch, seg_ch, hidden):
    ks = jax.random.split(key, 8)
    n = lambda k, s, sc: jax.random.normal(k, s, jnp.float32) * sc
    cin = sr_ch + seg_ch
    return dict(
        proj_w=n(ks[0], (hidden, cin), 0.3),        proj_b=n(ks[1], (hidden,), 0.05),
        f1_w=n(ks[2], (hidden, hidden, 7), 0.08),   f1_b=n(ks[3], (hidden,), 0.05),
        f2_w=n(ks[4], (hidden, hidden, 7), 0.08),   f2_b=n(ks[5], (hidden,), 0.05),
        out_w=n(ks[6], (seg_ch, hidden), 0.15),     out_b=n(ks[7], (seg_ch,), 0.05),
    )


# ---- pure-JAX NCHW reference used to verify kernel semantics ----
def spatial_fusion_reference(sr_fe, seg_fe, p):
    dn = ('NCHW', 'OIHW', 'NCHW')
    conv = lambda v, w, pad: jax.lax.conv_general_dilated(
        v, w, (1, 1), pad, dimension_numbers=dn)
    x = jnp.concatenate([sr_fe, seg_fe], axis=1)
    proj = jax.nn.relu(conv(x, p['proj_w'][:, :, None, None], [(0, 0), (0, 0)])
                       + p['proj_b'][None, :, None, None])
    f1 = conv(proj, p['f1_w'][:, :, :, None], [(3, 3), (0, 0)]) + p['f1_b'][None, :, None, None]
    f2 = conv(proj, p['f2_w'][:, :, None, :], [(0, 0), (3, 3)]) + p['f2_b'][None, :, None, None]
    s = jax.nn.relu(f1 + f2)
    out = conv(s, p['out_w'][:, :, None, None], [(0, 0), (0, 0)]) + p['out_b'][None, :, None, None]
    return jax.nn.sigmoid(out)


if __name__ == "__main__":
    key = jax.random.PRNGKey(0)
    k_sr, k_seg, k_p, k_sr2, k_seg2 = jax.random.split(key, 5)
    sr_ch, seg_ch, H, W, hidden = 4, 4, 16, 16, 32
    params = init_params(k_p, sr_ch, seg_ch, hidden)

    # Main check: B=2 -> T=1, grid=(2,)
    B = 2
    sr_fe = jax.random.normal(k_sr, (B, sr_ch, H, W), jnp.float32)
    seg_fe = jax.random.normal(k_seg, (B, seg_ch, H, W), jnp.float32)
    out = jax.block_until_ready(spatial_fusion_forward(sr_fe, seg_fe, params))
    ref = jax.block_until_ready(spatial_fusion_reference(sr_fe, seg_fe, params))
    assert out.shape == (B, seg_ch, H, W)
    np.testing.assert_allclose(np.asarray(out), np.asarray(ref), atol=1e-4, rtol=1e-4)

    # Also exercise the multi-image-per-step path: B=4 -> T=2, grid=(2,)
    B2 = 4
    sr2 = jax.random.normal(k_sr2, (B2, sr_ch, H, W), jnp.float32)
    seg2 = jax.random.normal(k_seg2, (B2, seg_ch, H, W), jnp.float32)
    out2 = jax.block_until_ready(spatial_fusion_forward(sr2, seg2, params))
    ref2 = jax.block_until_ready(spatial_fusion_reference(sr2, seg2, params))
    np.testing.assert_allclose(np.asarray(out2), np.asarray(ref2), atol=1e-4, rtol=1e-4)

    print("KERNEL_OK")
</pallas_src>

<mosaic_0001>
module attributes {stable_mosaic.version = 11 : i64} {
  func.func @spatial_fusion_kernel(%arg0: i32, %arg1: memref<1x8x256xf32, #tpu.memory_space<vmem>>, %arg2: memref<32x8xf32, #tpu.memory_space<vmem>>, %arg3: memref<32x1xf32, #tpu.memory_space<vmem>>, %arg4: memref<32x416xf32, #tpu.memory_space<vmem>>, %arg5: memref<32x1xf32, #tpu.memory_space<vmem>>, %arg6: memref<4x32xf32, #tpu.memory_space<vmem>>, %arg7: memref<4x1xf32, #tpu.memory_space<vmem>>, %arg8: memref<1x4x256xf32, #tpu.memory_space<vmem>>, %arg9: memref<32x512xf32, #tpu.memory_space<vmem>>, %arg10: memref<416x256xf32, #tpu.memory_space<vmem>>) attributes {dimension_semantics = [#tpu.dimension_semantics<parallel>], iteration_bounds = array<i64: 2>, scalar_prefetch = 0 : i64, scratch_operands = 2 : i64, tpu.core_type = #tpu.core_type<tc>, window_params = [{transform_indices = @transform_0, window_bounds = array<i64: 1, 8, 256>}, {pipeline_mode = #tpu.pipeline_mode<synchronous>, transform_indices = @transform_1, window_bounds = array<i64: 32, 8>}, {pipeline_mode = #tpu.pipeline_mode<synchronous>, transform_indices = @transform_2, window_bounds = array<i64: 32, 1>}, {pipeline_mode = #tpu.pipeline_mode<synchronous>, transform_indices = @transform_3, window_bounds = array<i64: 32, 416>}, {pipeline_mode = #tpu.pipeline_mode<synchronous>, transform_indices = @transform_4, window_bounds = array<i64: 32, 1>}, {pipeline_mode = #tpu.pipeline_mode<synchronous>, transform_indices = @transform_5, window_bounds = array<i64: 4, 32>}, {pipeline_mode = #tpu.pipeline_mode<synchronous>, transform_indices = @transform_6, window_bounds = array<i64: 4, 1>}, {transform_indices = @transform_7, window_bounds = array<i64: 1, 4, 256>}]} {
    %cst = arith.constant 0.000000e+00 : f32
    %0 = vector.broadcast %cst : f32 to vector<32x128xf32>
    %c0 = arith.constant 0 : index
    %c0_0 = arith.constant 0 : index
    %1 = vector.load %arg9[%c0, %c0_0] : memref<32x512xf32, #tpu.memory_space<vmem>>, vector<32x128xf32>
    tpu.vector_store %arg9[%c0, %c0_0], %0 {strides = array<i32>} : memref<32x512xf32, #tpu.memory_space<vmem>>, vector<32x128xf32>,
    %cst_1 = arith.constant 0.000000e+00 : f32
    %2 = vector.broadcast %cst_1 : f32 to vector<32x128xf32>
    %c0_2 = arith.constant 0 : index
    %c384 = arith.constant 384 : index
    %3 = vector.load %arg9[%c0_2, %c384] : memref<32x512xf32, #tpu.memory_space<vmem>>, vector<32x128xf32>
    tpu.vector_store %arg9[%c0_2, %c384], %2 {strides = array<i32>} : memref<32x512xf32, #tpu.memory_space<vmem>>, vector<32x128xf32>,
    %4 = tpu.iota {dimensions = array<i32: 1>} : vector<1x256xi32>
    %c16_i32 = arith.constant 16 : i32
    %c0_i32 = arith.constant 0 : i32
    %5 = arith.cmpi eq, %c16_i32, %c0_i32 : i32
    %c1_i32 = arith.constant 1 : i32
    %6 = arith.select %5, %c1_i32, %c16_i32 : i32
    %7 = vector.broadcast %6 : i32 to vector<1x256xi32>
    %8 = arith.remsi %4, %7 : vector<1x256xi32>
    %c0_i32_3 = arith.constant 0 : i32
    %9 = vector.broadcast %c0_i32_3 : i32 to vector<1x256xi32>
    %10 = arith.cmpi ne, %8, %9 : vector<1x256xi32>
    %c0_i32_4 = arith.constant 0 : i32
    %11 = vector.broadcast %c0_i32_4 : i32 to vector<1x256xi32>
    %12 = arith.cmpi slt, %8, %11 : vector<1x256xi32>
    %c0_i32_5 = arith.constant 0 : i32
    %13 = arith.cmpi slt, %6, %c0_i32_5 : i32
    %14 = vector.broadcast %13 : i1 to vector<1x256xi1>
    %15 = vector.broadcast %14 : vector<1x256xi1> to vector<1x256xi1>
    %16 = arith.xori %12, %15 : vector<1x256xi1>
    %17 = arith.andi %16, %10 : vector<1x256xi1>
    %18 = vector.broadcast %6 : i32 to vector<1x256xi32>
    %19 = arith.addi %8, %18 : vector<1x256xi32>
    %20 = arith.select %17, %19, %8 : vector<1x256xi1>, vector<1x256xi32>
    %c-3_i32 = arith.constant -3 : i32
    %21 = vector.broadcast %c-3_i32 : i32 to vector<1x256xi32>
    %22 = arith.addi %20, %21 : vector<1x256xi32>
    %c0_i32_6 = arith.constant 0 : i32
    %23 = vector.broadcast %c0_i32_6 : i32 to vector<1x256xi32>
    %24 = arith.cmpi sge, %22, %23 : vector<1x256xi32>
    %c-3_i32_7 = arith.constant -3 : i32
    %25 = vector.broadcast %c-3_i32_7 : i32 to vector<1x256xi32>
    %26 = arith.addi %20, %25 : vector<1x256xi32>
    %c16_i32_8 = arith.constant 16 : i32
    %27 = vector.broadcast %c16_i32_8 : i32 to vector<1x256xi32>
    %28 = arith.cmpi slt, %26, %27 : vector<1x256xi32>
    %29 = arith.andi %24, %28 : vector<1x256xi1>
    %c-2_i32 = arith.constant -2 : i32
    %30 = vector.broadcast %c-2_i32 : i32 to vector<1x256xi32>
    %31 = arith.addi %20, %30 : vector<1x256xi32>
    %c0_i32_9 = arith.constant 0 : i32
    %32 = vector.broadcast %c0_i32_9 : i32 to vector<1x256xi32>
    %33 = arith.cmpi sge, %31, %32 : vector<1x256xi32>
    %c-2_i32_10 = arith.constant -2 : i32
    %34 = vector.broadcast %c-2_i32_10 : i32 to vector<1x256xi32>
    %35 = arith.addi %20, %34 : vector<1x256xi32>
    %c16_i32_11 = arith.constant 16 : i32
    %36 = vector.broadcast %c16_i32_11 : i32 to vector<1x256xi32>
    %37 = arith.cmpi slt, %35, %36 : vector<1x256xi32>
    %38 = arith.andi %33, %37 : vector<1x256xi1>
    %c-1_i32 = arith.constant -1 : i32
    %39 = vector.broadcast %c-1_i32 : i32 to vector<1x256xi32>
    %40 = arith.addi %20, %39 : vector<1x256xi32>
    %c0_i32_12 = arith.constant 0 : i32
    %41 = vector.broadcast %c0_i32_12 : i32 to vector<1x256xi32>
    %42 = arith.cmpi sge, %40, %41 : vector<1x256xi32>
    %c-1_i32_13 = arith.constant -1 : i32
    %43 = vector.broadcast %c-1_i32_13 : i32 to vector<1x256xi32>
    %44 = arith.addi %20, %43 : vector<1x256xi32>
    %c16_i32_14 = arith.constant 16 : i32
    %45 = vector.broadcast %c16_i32_14 : i32 to vector<1x256xi32>
    %46 = arith.cmpi slt, %44, %45 : vector<1x256xi32>
    %47 = arith.andi %42, %46 : vector<1x256xi1>
    %c1_i32_15 = arith.constant 1 : i32
    %48 = vector.broadcast %c1_i32_15 : i32 to vector<1x256xi32>
    %49 = arith.addi %20, %48 : vector<1x256xi32>
    %c0_i32_16 = arith.constant 0 : i32
    %50 = vector.broadcast %c0_i32_16 : i32 to vector<1x256xi32>
    %51 = arith.cmpi sge, %49, %50 : vector<1x256xi32>
    %c1_i32_17 = arith.constant 1 : i32
    %52 = vector.broadcast %c1_i32_17 : i32 to vector<1x256xi32>
    %53 = arith.addi %20, %52 : vector<1x256xi32>
    %c16_i32_18 = arith.constant 16 : i32
    %54 = vector.broadcast %c16_i32_18 : i32 to vector<1x256xi32>
    %55 = arith.cmpi slt, %53, %54 : vector<1x256xi32>
    %56 = arith.andi %51, %55 : vector<1x256xi1>
    %c2_i32 = arith.constant 2 : i32
    %57 = vector.broadcast %c2_i32 : i32 to vector<1x256xi32>
    %58 = arith.addi %20, %57 : vector<1x256xi32>
    %c0_i32_19 = arith.constant 0 : i32
    %59 = vector.broadcast %c0_i32_19 : i32 to vector<1x256xi32>
    %60 = arith.cmpi sge, %58, %59 : vector<1x256xi32>
    %c2_i32_20 = arith.constant 2 : i32
    %61 = vector.broadcast %c2_i32_20 : i32 to vector<1x256xi32>
    %62 = arith.addi %20, %61 : vector<1x256xi32>
    %c16_i32_21 = arith.constant 16 : i32
    %63 = vector.broadcast %c16_i32_21 : i32 to vector<1x256xi32>
    %64 = arith.cmpi slt, %62, %63 : vector<1x256xi32>
    %65 = arith.andi %60, %64 : vector<1x256xi1>
    %c3_i32 = arith.constant 3 : i32
    %66 = vector.broadcast %c3_i32 : i32 to vector<1x256xi32>
    %67 = arith.addi %20, %66 : vector<1x256xi32>
    %c0_i32_22 = arith.constant 0 : i32
    %68 = vector.broadcast %c0_i32_22 : i32 to vector<1x256xi32>
    %69 = arith.cmpi sge, %67, %68 : vector<1x256xi32>
    %c3_i32_23 = arith.constant 3 : i32
    %70 = vector.broadcast %c3_i32_23 : i32 to vector<1x256xi32>
    %71 = arith.addi %20, %70 : vector<1x256xi32>
    %c16_i32_24 = arith.constant 16 : i32
    %72 = vector.broadcast %c16_i32_24 : i32 to vector<1x256xi32>
    %73 = arith.cmpi slt, %71, %72 : vector<1x256xi32>
    %74 = arith.andi %69, %73 : vector<1x256xi1>
    %c0_25 = arith.constant 0 : index
    %c0_26 = arith.constant 0 : index
    %75 = vector.load %arg2[%c0_25, %c0_26] : memref<32x8xf32, #tpu.memory_space<vmem>>, vector<32x8xf32>
    %c0_27 = arith.constant 0 : index
    %c0_28 = arith.constant 0 : index
    %c0_29 = arith.constant 0 : index
    %76 = vector.load %arg1[%c0_27, %c0_28, %c0_29] : memref<1x8x256xf32, #tpu.memory_space<vmem>>, vector<1x8x256xf32>
    %77 = vector.shape_cast %76 : vector<1x8x256xf32> to vector<8x256xf32>
    %cst_30 = arith.constant dense<0.000000e+00> : vector<32x256xf32>
    %78 = tpu.matmul %75, %77, %cst_30 {dimension_numbers = #tpu.dot_dimension_numbers<[1], [0], [0], [1], [0, 0, 1, 1], [], []>} : vector<32x8xf32>, vector<8x256xf32>, vector<32x256xf32> -> vector<32x256xf32>
    %c0_31 = arith.constant 0 : index
    %c0_32 = arith.constant 0 : index
    %79 = vector.load %arg3[%c0_31, %c0_32] : memref<32x1xf32, #tpu.memory_space<vmem>>, vector<32x1xf32>
    %80 = vector.broadcast %79 : vector<32x1xf32> to vector<32x256xf32>
    %81 = arith.addf %78, %80 : vector<32x256xf32>
    %cst_33 = arith.constant 0.000000e+00 : f32
    %82 = vector.broadcast %cst_33 : f32 to vector<32x256xf32>
    %83 = arith.maximumf %81, %82 : vector<32x256xf32>
    %c0_34 = arith.constant 0 : index
    %c128 = arith.constant 128 : index
    %84 = vector.load %arg9[%c0_34, %c128] : memref<32x512xf32, #tpu.memory_space<vmem>>, vector<32x256xf32>
    tpu.vector_store %arg9[%c0_34, %c128], %83 {strides = array<i32>} : memref<32x512xf32, #tpu.memory_space<vmem>>, vector<32x256xf32>,
    %c0_35 = arith.constant 0 : index
    %c0_36 = arith.constant 0 : index
    %85 = vector.load %arg10[%c0_35, %c0_36] : memref<416x256xf32, #tpu.memory_space<vmem>>, vector<32x256xf32>
    tpu.vector_store %arg10[%c0_35, %c0_36], %83 {strides = array<i32>} : memref<416x256xf32, #tpu.memory_space<vmem>>, vector<32x256xf32>,
    %c0_37 = arith.constant 0 : index
    %c80 = arith.constant 80 : index
    %86 = vector.load %arg9[%c0_37, %c80] : memref<32x512xf32, #tpu.memory_space<vmem>>, vector<32x256xf32>
    %c32 = arith.constant 32 : index
    %c0_38 = arith.constant 0 : index
    %87 = vector.load %arg10[%c32, %c0_38] : memref<416x256xf32, #tpu.memory_space<vmem>>, vector<32x256xf32>
    tpu.vector_store %arg10[%c32, %c0_38], %86 {strides = array<i32>} : memref<416x256xf32, #tpu.memory_space<vmem>>, vector<32x256xf32>,
    %c0_39 = arith.constant 0 : index
    %c125 = arith.constant 125 : index
    %88 = vector.load %arg9[%c0_39, %c125] : memref<32x512xf32, #tpu.memory_space<vmem>>, vector<32x256xf32>
    %cst_40 = arith.constant 0.000000e+00 : f32
    %89 = vector.shape_cast %29 : vector<1x256xi1> to vector<1x256xi1>
    %90 = vector.broadcast %89 : vector<1x256xi1> to vector<32x256xi1>
    %91 = vector.broadcast %cst_40 : f32 to vector<32x256xf32>
    %92 = arith.select %90, %88, %91 : vector<32x256xi1>, vector<32x256xf32>
    %c224 = arith.constant 224 : index
    %c0_41 = arith.constant 0 : index
    %93 = vector.load %arg10[%c224, %c0_41] : memref<416x256xf32, #tpu.memory_space<vmem>>, vector<32x256xf32>
    tpu.vector_store %arg10[%c224, %c0_41], %92 {strides = array<i32>} : memref<416x256xf32, #tpu.memory_space<vmem>>, vector<32x256xf32>,
    %c0_42 = arith.constant 0 : index
    %c96 = arith.constant 96 : index
    %94 = vector.load %arg9[%c0_42, %c96] : memref<32x512xf32, #tpu.memory_space<vmem>>, vector<32x256xf32>
    %c64 = arith.constant 64 : index
    %c0_43 = arith.constant 0 : index
    %95 = vector.load %arg10[%c64, %c0_43] : memref<416x256xf32, #tpu.memory_space<vmem>>, vector<32x256xf32>
    tpu.vector_store %arg10[%c64, %c0_43], %94 {strides = array<i32>} : memref<416x256xf32, #tpu.memory_space<vmem>>, vector<32x256xf32>,
    %c0_44 = arith.constant 0 : index
    %c126 = arith.constant 126 : index
    %96 = vector.load %arg9[%c0_44, %c126] : memref<32x512xf32, #tpu.memory_space<vmem>>, vector<32x256xf32>
    %cst_45 = arith.constant 0.000000e+00 : f32
    %97 = vector.shape_cast %38 : vector<1x256xi1> to vector<1x256xi1>
    %98 = vector.broadcast %97 : vector<1x256xi1> to vector<32x256xi1>
    %99 = vector.broadcast %cst_45 : f32 to vector<32x256xf32>
    %100 = arith.select %98, %96, %99 : vector<32x256xi1>, vector<32x256xf32>
    %c256 = arith.constant 256 : index
    %c0_46 = arith.constant 0 : index
    %101 = vector.load %arg10[%c256, %c0_46] : memref<416x256xf32, #tpu.memory_space<vmem>>, vector<32x256xf32>
    tpu.vector_store %arg10[%c256, %c0_46], %100 {strides = array<i32>} : memref<416x256xf32, #tpu.memory_space<vmem>>, vector<32x256xf32>,
    %c0_47 = arith.constant 0 : index
    %c112 = arith.constant 112 : index
    %102 = vector.load %arg9[%c0_47, %c112] : memref<32x512xf32, #tpu.memory_space<vmem>>, vector<32x256xf32>
    %c96_48 = arith.constant 96 : index
    %c0_49 = arith.constant 0 : index
    %103 = vector.load %arg10[%c96_48, %c0_49] : memref<416x256xf32, #tpu.memory_space<vmem>>, vector<32x256xf32>
    tpu.vector_store %arg10[%c96_48, %c0_49], %102 {strides = array<i32>} : memref<416x256xf32, #tpu.memory_space<vmem>>, vector<32x256xf32>,
    %c0_50 = arith.constant 0 : index
    %c127 = arith.constant 127 : index
    %104 = vector.load %arg9[%c0_50, %c127] : memref<32x512xf32, #tpu.memory_space<vmem>>, vector<32x256xf32>
    %cst_51 = arith.constant 0.000000e+00 : f32
    %105 = vector.shape_cast %47 : vector<1x256xi1> to vector<1x256xi1>
    %106 = vector.broadcast %105 : vector<1x256xi1> to vector<32x256xi1>
    %107 = vector.broadcast %cst_51 : f32 to vector<32x256xf32>
    %108 = arith.select %106, %104, %107 : vector<32x256xi1>, vector<32x256xf32>
    %c288 = arith.constant 288 : index
    %c0_52 = arith.constant 0 : index
    %109 = vector.load %arg10[%c288, %c0_52] : memref<416x256xf32, #tpu.memory_space<vmem>>, vector<32x256xf32>
    tpu.vector_store %arg10[%c288, %c0_52], %108 {strides = array<i32>} : memref<416x256xf32, #tpu.memory_space<vmem>>, vector<32x256xf32>,
    %c0_53 = arith.constant 0 : index
    %c144 = arith.constant 144 : index
    %110 = vector.load %arg9[%c0_53, %c144] : memref<32x512xf32, #tpu.memory_space<vmem>>, vector<32x256xf32>
    %c128_54 = arith.constant 128 : index
    %c0_55 = arith.constant 0 : index
    %111 = vector.load %arg10[%c128_54, %c0_55] : memref<416x256xf32, #tpu.memory_space<vmem>>, vector<32x256xf32>
    tpu.vector_store %arg10[%c128_54, %c0_55], %110 {strides = array<i32>} : memref<416x256xf32, #tpu.memory_space<vmem>>, vector<32x256xf32>,
    %c0_56 = arith.constant 0 : index
    %c129 = arith.constant 129 : index
    %112 = vector.load %arg9[%c0_56, %c129] : memref<32x512xf32, #tpu.memory_space<vmem>>, vector<32x256xf32>
    %cst_57 = arith.constant 0.000000e+00 : f32
    %113 = vector.shape_cast %56 : vector<1x256xi1> to vector<1x256xi1>
    %114 = vector.broadcast %113 : vector<1x256xi1> to vector<32x256xi1>
    %115 = vector.broadcast %cst_57 : f32 to vector<32x256xf32>
    %116 = arith.select %114, %112, %115 : vector<32x256xi1>, vector<32x256xf32>
    %c320 = arith.constant 320 : index
    %c0_58 = arith.constant 0 : index
    %117 = vector.load %arg10[%c320, %c0_58] : memref<416x256xf32, #tpu.memory_space<vmem>>, vector<32x256xf32>
    tpu.vector_store %arg10[%c320, %c0_58], %116 {strides = array<i32>} : memref<416x256xf32, #tpu.memory_space<vmem>>, vector<32x256xf32>,
    %c0_59 = arith.constant 0 : index
    %c160 = arith.constant 160 : index
    %118 = vector.load %arg9[%c0_59, %c160] : memref<32x512xf32, #tpu.memory_space<vmem>>, vector<32x256xf32>
    %c160_60 = arith.constant 160 : index
    %c0_61 = arith.constant 0 : index
    %119 = vector.load %arg10[%c160_60, %c0_61] : memref<416x256xf32, #tpu.memory_space<vmem>>, vector<32x256xf32>
    tpu.vector_store %arg10[%c160_60, %c0_61], %118 {strides = array<i32>} : memref<416x256xf32, #tpu.memory_space<vmem>>, vector<32x256xf32>,
    %c0_62 = arith.constant 0 : index
    %c130 = arith.constant 130 : index
    %120 = vector.load %arg9[%c0_62, %c130] : memref<32x512xf32, #tpu.memory_space<vmem>>, vector<32x256xf32>
    %cst_63 = arith.constant 0.000000e+00 : f32
    %121 = vector.shape_cast %65 : vector<1x256xi1> to vector<1x256xi1>
    %122 = vector.broadcast %121 : vector<1x256xi1> to vector<32x256xi1>
    %123 = vector.broadcast %cst_63 : f32 to vector<32x256xf32>
    %124 = arith.select %122, %120, %123 : vector<32x256xi1>, vector<32x256xf32>
    %c352 = arith.constant 352 : index
    %c0_64 = arith.constant 0 : index
    %125 = vector.load %arg10[%c352, %c0_64] : memref<416x256xf32, #tpu.memory_space<vmem>>, vector<32x256xf32>
    tpu.vector_store %arg10[%c352, %c0_64], %124 {strides = array<i32>} : memref<416x256xf32, #tpu.memory_space<vmem>>, vector<32x256xf32>,
    %c0_65 = arith.constant 0 : index
    %c176 = arith.constant 176 : index
    %126 = vector.load %arg9[%c0_65, %c176] : memref<32x512xf32, #tpu.memory_space<vmem>>, vector<32x256xf32>
    %c192 = arith.constant 192 : index
    %c0_66 = arith.constant 0 : index
    %127 = vector.load %arg10[%c192, %c0_66] : memref<416x256xf32, #tpu.memory_space<vmem>>, vector<32x256xf32>
    tpu.vector_store %arg10[%c192, %c0_66], %126 {strides = array<i32>} : memref<416x256xf32, #tpu.memory_space<vmem>>, vector<32x256xf32>,
    %c0_67 = arith.constant 0 : index
    %c131 = arith.constant 131 : index
    %128 = vector.load %arg9[%c0_67, %c131] : memref<32x512xf32, #tpu.memory_space<vmem>>, vector<32x256xf32>
    %cst_68 = arith.constant 0.000000e+00 : f32
    %129 = vector.shape_cast %74 : vector<1x256xi1> to vector<1x256xi1>
    %130 = vector.broadcast %129 : vector<1x256xi1> to vector<32x256xi1>
    %131 = vector.broadcast %cst_68 : f32 to vector<32x256xf32>
    %132 = arith.select %130, %128, %131 : vector<32x256xi1>, vector<32x256xf32>
    %c384_69 = arith.constant 384 : index
    %c0_70 = arith.constant 0 : index
    %133 = vector.load %arg10[%c384_69, %c0_70] : memref<416x256xf32, #tpu.memory_space<vmem>>, vector<32x256xf32>
    tpu.vector_store %arg10[%c384_69, %c0_70], %132 {strides = array<i32>} : memref<416x256xf32, #tpu.memory_space<vmem>>, vector<32x256xf32>,
    %c0_71 = arith.constant 0 : index
    %c0_72 = arith.constant 0 : index
    %134 = vector.load %arg4[%c0_71, %c0_72] : memref<32x416xf32, #tpu.memory_space<vmem>>, vector<32x416xf32>
    %c0_73 = arith.constant 0 : index
    %c0_74 = arith.constant 0 : index
    %135 = vector.load %arg10[%c0_73, %c0_74] : memref<416x256xf32, #tpu.memory_space<vmem>>, vector<416x256xf32>
    %cst_75 = arith.constant dense<0.000000e+00> : vector<32x256xf32>
    %136 = tpu.matmul %134, %135, %cst_75 {dimension_numbers = #tpu.dot_dimension_numbers<[1], [0], [0], [1], [0, 0, 1, 1], [], []>} : vector<32x416xf32>, vector<416x256xf32>, vector<32x256xf32> -> vector<32x256xf32>
    %c0_76 = arith.constant 0 : index
    %c0_77 = arith.constant 0 : index
    %137 = vector.load %arg5[%c0_76, %c0_77] : memref<32x1xf32, #tpu.memory_space<vmem>>, vector<32x1xf32>
    %138 = vector.broadcast %137 : vector<32x1xf32> to vector<32x256xf32>
    %139 = arith.addf %136, %138 : vector<32x256xf32>
    %cst_78 = arith.constant 0.000000e+00 : f32
    %140 = vector.broadcast %cst_78 : f32 to vector<32x256xf32>
    %141 = arith.maximumf %139, %140 : vector<32x256xf32>
    %c0_79 = arith.constant 0 : index
    %c0_80 = arith.constant 0 : index
    %142 = vector.load %arg6[%c0_79, %c0_80] : memref<4x32xf32, #tpu.memory_space<vmem>>, vector<4x32xf32>
    %cst_81 = arith.constant dense<0.000000e+00> : vector<4x256xf32>
    %143 = tpu.matmul %142, %141, %cst_81 {dimension_numbers = #tpu.dot_dimension_numbers<[1], [0], [0], [1], [0, 0, 1, 1], [], []>} : vector<4x32xf32>, vector<32x256xf32>, vector<4x256xf32> -> vector<4x256xf32>
    %c0_82 = arith.constant 0 : index
    %c0_83 = arith.constant 0 : index
    %144 = vector.load %arg7[%c0_82, %c0_83] : memref<4x1xf32, #tpu.memory_space<vmem>>, vector<4x1xf32>
    %145 = vector.broadcast %144 : vector<4x1xf32> to vector<4x256xf32>
    %146 = arith.addf %143, %145 : vector<4x256xf32>
    %cst_84 = arith.constant 0.000000e+00 : f32
    %147 = vector.broadcast %cst_84 : f32 to vector<4x256xf32>
    %148 = arith.subf %147, %146 : vector<4x256xf32>
    %149 = math.exp %148 : vector<4x256xf32>
    %cst_85 = arith.constant 1.000000e+00 : f32
    %150 = vector.broadcast %cst_85 : f32 to vector<4x256xf32>
    %151 = arith.addf %150, %149 : vector<4x256xf32>
    %cst_86 = arith.constant 1.000000e+00 : f32
    %152 = vector.broadcast %cst_86 : f32 to vector<4x256xf32>
    %153 = arith.divf %152, %151 : vector<4x256xf32>
    %c0_87 = arith.constant 0 : index
    %c0_88 = arith.constant 0 : index
    %c0_89 = arith.constant 0 : index
    %154 = vector.load %arg8[%c0_87, %c0_88, %c0_89] : memref<1x4x256xf32, #tpu.memory_space<vmem>>, vector<1x4x256xf32>
    %155 = vector.shape_cast %154 : vector<1x4x256xf32> to vector<4x256xf32>
    %156 = vector.shape_cast %153 : vector<4x256xf32> to vector<1x4x256xf32>
    tpu.vector_store %arg8[%c0_87, %c0_88, %c0_89], %156 {strides = array<i32>} : memref<1x4x256xf32, #tpu.memory_space<vmem>>, vector<1x4x256xf32>,
    return
  }
  func.func @transform_0(%arg0: i32) -> (i32, i32, i32) {
    %c0_i32 = arith.constant 0 : i32
    %c0_i32_0 = arith.constant 0 : i32
    %c0_i32_1 = arith.constant 0 : i32
    return %arg0, %c0_i32, %c0_i32_0 : i32, i32, i32
  }
  func.func @transform_1(%arg0: i32) -> (i32, i32) {
    %c0_i32 = arith.constant 0 : i32
    %c0_i32_0 = arith.constant 0 : i32
    %c0_i32_1 = arith.constant 0 : i32
    return %c0_i32, %c0_i32_0 : i32, i32
  }
  func.func @transform_2(%arg0: i32) -> (i32, i32) {
    %c0_i32 = arith.constant 0 : i32
    %c0_i32_0 = arith.constant 0 : i32
    %c0_i32_1 = arith.constant 0 : i32
    return %c0_i32, %c0_i32_0 : i32, i32
  }
  func.func @transform_3(%arg0: i32) -> (i32, i32) {
    %c0_i32 = arith.constant 0 : i32
    %c0_i32_0 = arith.constant 0 : i32
    %c0_i32_1 = arith.constant 0 : i32
    return %c0_i32, %c0_i32_0 : i32, i32
  }
  func.func @transform_4(%arg0: i32) -> (i32, i32) {
    %c0_i32 = arith.constant 0 : i32
    %c0_i32_0 = arith.constant 0 : i32
    %c0_i32_1 = arith.constant 0 : i32
    return %c0_i32, %c0_i32_0 : i32, i32
  }
  func.func @transform_5(%arg0: i32) -> (i32, i32) {
    %c0_i32 = arith.constant 0 : i32
    %c0_i32_0 = arith.constant 0 : i32
    %c0_i32_1 = arith.constant 0 : i32
    return %c0_i32, %c0_i32_0 : i32, i32
  }
  func.func @transform_6(%arg0: i32) -> (i32, i32) {
    %c0_i32 = arith.constant 0 : i32
    %c0_i32_0 = arith.constant 0 : i32
    %c0_i32_1 = arith.constant 0 : i32
    return %c0_i32, %c0_i32_0 : i32, i32
  }
  func.func @transform_7(%arg0: i32) -> (i32, i32, i32) {
    %c0_i32 = arith.constant 0 : i32
    %c0_i32_0 = arith.constant 0 : i32
    %c0_i32_1 = arith.constant 0 : i32
    return %arg0, %c0_i32, %c0_i32_0 : i32, i32, i32
  }
}

</mosaic_0001>

<llo_original>
// kernel: tpu_custom_call.1
$region0: #{tpu_custom_call.1}
  #allocation0 [shape = 'u32[]', space=smem, size = 0x4, offset = 0x4, fixed_abs, tag = 'smem constant byte address 0x4 - core index']
  #allocation1 [shape = 'u32[144,128]{1,0:T(1,128)}', space=vmem, size = 0x12000, scoped, tag = 'internal scratch']
  #allocation2 [shape = 'f32[32,512]{1,0:T(8,128)}', space=vmem, size = 0x10000, scoped, tag = 'scratch operand']
  #allocation3 [shape = 'f32[416,256]{1,0:T(8,128)}', space=vmem, size = 0x68000, scoped, tag = 'scratch operand']
  %s0 = inlined_call_operand.vmem [shape: f32[2,8,256], index: 0, kind: input, shape index: {}]
  %s1 = inlined_call_operand.vmem [shape: f32[32,8], index: 1, kind: input, shape index: {}]
  %s2 = inlined_call_operand.vmem [shape: f32[32,1], index: 2, kind: input, shape index: {}]
  %s3 = inlined_call_operand.hbm [shape: f32[32,416], index: 3, kind: input, shape index: {}]
  %s4 = inlined_call_operand.vmem [shape: f32[32,1], index: 4, kind: input, shape index: {}]
  %s5 = inlined_call_operand.vmem [shape: f32[4,32], index: 5, kind: input, shape index: {}]
  %s6 = inlined_call_operand.vmem [shape: f32[4,1], index: 6, kind: input, shape index: {}]
  %s7 = inlined_call_operand.hbm [shape: f32[2,4,256], index: 7, kind: output, shape index: {}]
  %s8 = sld [smem:[#allocation0]]
  $region65: #{tpu_custom_call.1} parent=0
    _
  %s10 = ssub.s32 1, %s8
  %s11 = scalar_select 0, %s10, %s8
  $region1: #{tpu_custom_call.1} parent=0
    #allocation4 [shape = 'u8[65536]{0}', space=vmem, size = 0x10000, scoped, tag = 'input window, operand 3, single buffered']
    #allocation5 [shape = 's32[2]{0}', space=sflag, size = 0x8, scoped, tag = 'scoped memory for tpu_custom_call.1']
    #allocation6 [shape = 's32[2]{0}', space=sflag, size = 0x8, scoped, tag = 'scoped memory for tpu_custom_call.1']
    #allocation7 [shape = 'u8[8192]{0}', space=vmem, size = 0x2000, scoped, tag = 'output window, operand 0']
    %12 = vsyncpa [#allocation5], 0
    %13 = vsyncpa [#allocation6], 0
    %s14 = scalar_lea.sflag [#allocation6], 1
    %15 = vsyncpa %s14, 0
    loop: start=0, step=1, limit=4
    $region2: #{tpu_custom_call.1} parent=1 // loop_pre_header
      _
    $region3: #{tpu_custom_call.1} parent=1 // loop_header
      %s17 = sphi 0, %s21
      %p18 = scmp.ge.s32.totalorder %s17, 4
      %s27 = sphi 0, %s29
      %s30 = sphi 0, %s27
      %s31 = sphi 0, %s30
      %s47 = sphi 0, %s31
      %s51 = sphi 0, %s51
      %s53 = sphi 0, %s51
      %s54 = sphi 0, %s53
      %s68 = sphi 0, %s54
      %s72 = sphi 0, %s72
      %s74 = sphi 0, %s72
      %s75 = sphi 0, %s74
      %s89 = sphi 0, %s75
      %s93 = sphi 0, %s93
      %s95 = sphi 0, %s93
      %s96 = sphi 0, %s95
      %s110 = sphi 0, %s96
      %s114 = sphi 0, %s114
      %s116 = sphi 0, %s114
      %s117 = sphi 0, %s116
      %s131 = sphi 0, %s117
      %s135 = sphi 0, %s135
      %s137 = sphi 0, %s135
      %s138 = sphi 0, %s137
      %s152 = sphi 0, %s138
      %s156 = sphi 0, %s156
      %s158 = sphi 0, %s156
      %s159 = sphi 0, %s158
      %s173 = sphi 0, %s159
      %s179 = sphi 0, %s181
      %s182 = sphi 0, %s179
      %s183 = sphi 0, %s182
      %s199 = sphi 0, %s183
    $region4: #{tpu_custom_call.1} parent=1 // loop_header_branch
      %20 = sbr.rel (%p18) target = $region8
    $region5: #{tpu_custom_call.1} parent=1 // loop_body
      %s22 = ssub.s32 %s17, 1
      %s23 = ssub.s32 %s17, 2
      %s24 = sadd.s32 %s17, 1
      %s25 = ssub.s32 %s17, %s24
      %p26 = scmp.eq.s32.totalorder %s25, 0
      %s28 = sadd.s32 %s27, 1
      %s29 = scalar_select %p26, %s27, %s28
      %p32 = pneg %p26
      %p33 = scmp.eq.s32.totalorder %s17, 1
      %p34 = por %p32, %p33
      %p35 = scmp.ne.s32.totalorder %s27, %s30
      %p36 = scmp.eq.s32.totalorder %s17, 0
      %p37 = por %p35, %p36
      %p38 = scmp.ne.s32.totalorder %s27, %s30
      %p39 = scmp.eq.s32.totalorder %s22, 1
      %p40 = por %p38, %p39
      %p41 = scmp.ne.s32.totalorder %s30, %s31
      %p42 = scmp.eq.s32.totalorder %s22, 0
      %p43 = por %p41, %p42
      %p44 = scmp.ne.s32.totalorder %s30, %s31
      %p45 = scmp.eq.s32.totalorder %s23, 1
      %p46 = por %p44, %p45
      %p48 = scmp.ne.s32.totalorder %s31, %s47
      %p49 = scmp.eq.s32.totalorder %s23, 0
      %p50 = por %p48, %p49
      %s52 = sadd.s32 %s51, 1
      %p55 = scmp.eq.s32.totalorder %s17, 1
      %p56 = scmp.ne.s32.totalorder %s51, %s53
      %p57 = scmp.eq.s32.totalorder %s17, 0
      %p58 = por %p56, %p57
      %p59 = scmp.ne.s32.totalorder %s51, %s53
      %p60 = scmp.eq.s32.totalorder %s22, 1
      %p61 = por %p59, %p60
      %p62 = scmp.ne.s32.totalorder %s53, %s54
      %p63 = scmp.eq.s32.totalorder %s22, 0
      %p64 = por %p62, %p63
      %p65 = scmp.ne.s32.totalorder %s53, %s54
      %p66 = scmp.eq.s32.totalorder %s23, 1
      %p67 = por %p65, %p66
      %p69 = scmp.ne.s32.totalorder %s54, %s68
      %p70 = scmp.eq.s32.totalorder %s23, 0
      %p71 = por %p69, %p70
      %s73 = sadd.s32 %s72, 1
      %p76 = scmp.eq.s32.totalorder %s17, 1
      %p77 = scmp.ne.s32.totalorder %s72, %s74
      %p78 = scmp.eq.s32.totalorder %s17, 0
      %p79 = por %p77, %p78
      %p80 = scmp.ne.s32.totalorder %s72, %s74
      %p81 = scmp.eq.s32.totalorder %s22, 1
      %p82 = por %p80, %p81
      %p83 = scmp.ne.s32.totalorder %s74, %s75
      %p84 = scmp.eq.s32.totalorder %s22, 0
      %p85 = por %p83, %p84
      %p86 = scmp.ne.s32.totalorder %s74, %s75
      %p87 = scmp.eq.s32.totalorder %s23, 1
      %p88 = por %p86, %p87
      %p90 = scmp.ne.s32.totalorder %s75, %s89
      %p91 = scmp.eq.s32.totalorder %s23, 0
      %p92 = por %p90, %p91
      %s94 = sadd.s32 %s93, 1
      %p97 = scmp.eq.s32.totalorder %s17, 1
      %p98 = scmp.ne.s32.totalorder %s93, %s95
      %p99 = scmp.eq.s32.totalorder %s17, 0
      %p100 = por %p98, %p99
      %p101 = scmp.ne.s32.totalorder %s93, %s95
      %p102 = scmp.eq.s32.totalorder %s22, 1
      %p103 = por %p101, %p102
      %p104 = scmp.ne.s32.totalorder %s95, %s96
      %p105 = scmp.eq.s32.totalorder %s22, 0
      %p106 = por %p104, %p105
      %p107 = scmp.ne.s32.totalorder %s95, %s96
      %p108 = scmp.eq.s32.totalorder %s23, 1
      %p109 = por %p107, %p108
      %p111 = scmp.ne.s32.totalorder %s96, %s110
      %p112 = scmp.eq.s32.totalorder %s23, 0
      %p113 = por %p111, %p112
      %s115 = sadd.s32 %s114, 1
      %p118 = scmp.eq.s32.totalorder %s17, 1
      %p119 = scmp.ne.s32.totalorder %s114, %s116
      %p120 = scmp.eq.s32.totalorder %s17, 0
      %p121 = por %p119, %p120
      %p122 = scmp.ne.s32.totalorder %s114, %s116
      %p123 = scmp.eq.s32.totalorder %s22, 1
      %p124 = por %p122, %p123
      %p125 = scmp.ne.s32.totalorder %s116, %s117
      %p126 = scmp.eq.s32.totalorder %s22, 0
      %p127 = por %p125, %p126
      %p128 = scmp.ne.s32.totalorder %s116, %s117
      %p129 = scmp.eq.s32.totalorder %s23, 1
      %p130 = por %p128, %p129
      %p132 = scmp.ne.s32.totalorder %s117, %s131
      %p133 = scmp.eq.s32.totalorder %s23, 0
      %p134 = por %p132, %p133
      %s136 = sadd.s32 %s135, 1
      %p139 = scmp.eq.s32.totalorder %s17, 1
      %p140 = scmp.ne.s32.totalorder %s135, %s137
      %p141 = scmp.eq.s32.totalorder %s17, 0
      %p142 = por %p140, %p141
      %p143 = scmp.ne.s32.totalorder %s135, %s137
      %p144 = scmp.eq.s32.totalorder %s22, 1
      %p145 = por %p143, %p144
      %p146 = scmp.ne.s32.totalorder %s137, %s138
      %p147 = scmp.eq.s32.totalorder %s22, 0
      %p148 = por %p146, %p147
      %p149 = scmp.ne.s32.totalorder %s137, %s138
      %p150 = scmp.eq.s32.totalorder %s23, 1
      %p151 = por %p149, %p150
      %p153 = scmp.ne.s32.totalorder %s138, %s152
      %p154 = scmp.eq.s32.totalorder %s23, 0
      %p155 = por %p153, %p154
      %s157 = sadd.s32 %s156, 1
      %p160 = scmp.eq.s32.totalorder %s17, 1
      %p161 = scmp.ne.s32.totalorder %s156, %s158
      %p162 = scmp.eq.s32.totalorder %s17, 0
      %p163 = por %p161, %p162
      %p164 = scmp.ne.s32.totalorder %s156, %s158
      %p165 = scmp.eq.s32.totalorder %s22, 1
      %p166 = por %p164, %p165
      %p167 = scmp.ne.s32.totalorder %s158, %s159
      %p168 = scmp.eq.s32.totalorder %s22, 0
      %p169 = por %p167, %p168
      %p170 = scmp.ne.s32.totalorder %s158, %s159
      %p171 = scmp.eq.s32.totalorder %s23, 1
      %p172 = por %p170, %p171
      %p174 = scmp.ne.s32.totalorder %s159, %s173
      %p175 = scmp.eq.s32.totalorder %s23, 0
      %p176 = por %p174, %p175
      %s177 = ssub.s32 %s17, %s24
      %p178 = scmp.eq.s32.totalorder %s177, 0
      %s180 = sadd.s32 %s179, 1
      %s181 = scalar_select %p178, %s179, %s180
      %p184 = pneg %p178
      %p185 = scmp.eq.s32.totalorder %s17, 1
      %p186 = por %p184, %p185
      %p187 = scmp.ne.s32.totalorder %s179, %s182
      %p188 = scmp.eq.s32.totalorder %s17, 0
      %p189 = por %p187, %p188
      %p190 = scmp.ne.s32.totalorder %s179, %s182
      %p191 = scmp.eq.s32.totalorder %s22, 1
      %p192 = por %p190, %p191
      %p193 = scmp.ne.s32.totalorder %s182, %s183
      %p194 = scmp.eq.s32.totalorder %s22, 0
      %p195 = por %p193, %p194
      %p196 = scmp.ne.s32.totalorder %s182, %s183
      %p197 = scmp.eq.s32.totalorder %s23, 1
      %p198 = por %p196, %p197
      %p200 = scmp.ne.s32.totalorder %s183, %s199
      %p201 = scmp.eq.s32.totalorder %s23, 0
      %p202 = por %p200, %p201
      %p203 = scmp.le.s32.totalorder 1, %s17
      %p204 = scmp.lt.s32.totalorder %s17, 3
      %p205 = pnand %p203, %p204
      %p206 = pneg %p205
      // Predicated region
      $region9: #{tpu_custom_call.1} parent=5 // pred_check
        _
      $region10: #{tpu_custom_call.1} parent=5 // pred_check_branch
        %208 = sbr.rel (%p205) target = $region12
      $region11: #{tpu_custom_call.1} parent=5 // pred_region
        %s209 = ssub.s32 %s17, 1
        // Predicated region
        $region13: #{tpu_custom_call.1} parent=11 // pred_check
          %p210 = pneg %p64
        $region14: #{tpu_custom_call.1} parent=11 // pred_check_branch
          %212 = sbr.rel (%p210) target = $region16
        $region15: #{tpu_custom_call.1} parent=11 // pred_region
          _
        $region16: #{tpu_custom_call.1} parent=11 // pred_fallthru
          _
        // Predicated region
        $region17: #{tpu_custom_call.1} parent=11 // pred_check
          %p213 = pneg %p85
        $region18: #{tpu_custom_call.1} parent=11 // pred_check_branch
          %215 = sbr.rel (%p213) target = $region20
        $region19: #{tpu_custom_call.1} parent=11 // pred_region
          _
        $region20: #{tpu_custom_call.1} parent=11 // pred_fallthru
          _
        // Predicated region
        $region21: #{tpu_custom_call.1} parent=11 // pred_check
          %p216 = pneg %p106
        $region22: #{tpu_custom_call.1} parent=11 // pred_check_branch
          %218 = sbr.rel (%p216) target = $region24
        $region23: #{tpu_custom_call.1} parent=11 // pred_region
          %s220 = ssub.s32 2048, 2048
          %221 = vsyncadd [#allocation5], %s220
          %s222 = sshll.u32 [#allocation4], 4
          %s223 = int_to_ptr.vmem [resolvable:$true] %s222
          %228 = dma.hbm_to_vmem [thread:$0]  %s3, 2048, %s223, [#allocation5], 512, 512, 32
        $region24: #{tpu_custom_call.1} parent=11 // pred_fallthru
          _
        // Predicated region
        $region25: #{tpu_custom_call.1} parent=11 // pred_check
          %p229 = pneg %p127
        $region26: #{tpu_custom_call.1} parent=11 // pred_check_branch
          %231 = sbr.rel (%p229) target = $region28
        $region27: #{tpu_custom_call.1} parent=11 // pred_region
          _
        $region28: #{tpu_custom_call.1} parent=11 // pred_fallthru
          _
        // Predicated region
        $region29: #{tpu_custom_call.1} parent=11 // pred_check
          %p232 = pneg %p148
        $region30: #{tpu_custom_call.1} parent=11 // pred_check_branch
          %234 = sbr.rel (%p232) target = $region32
        $region31: #{tpu_custom_call.1} parent=11 // pred_region
          _
        $region32: #{tpu_custom_call.1} parent=11 // pred_fallthru
          _
        // Predicated region
        $region33: #{tpu_custom_call.1} parent=11 // pred_check
          %p235 = pneg %p169
        $region34: #{tpu_custom_call.1} parent=11 // pred_check_branch
          %237 = sbr.rel (%p235) target = $region36
        $region35: #{tpu_custom_call.1} parent=11 // pred_region
          _
        $region36: #{tpu_custom_call.1} parent=11 // pred_fallthru
          _
      $region12: #{tpu_custom_call.1} parent=5 // pred_fallthru
        _
      %p238 = scmp.lt.s32.totalorder %s17, 2
      // Predicated region
      $region37: #{tpu_custom_call.1} parent=5 // pred_check
        %p239 = pneg %p238
      $region38: #{tpu_custom_call.1} parent=5 // pred_check_branch
        %241 = sbr.rel (%p239) target = $region40
      $region39: #{tpu_custom_call.1} parent=5 // pred_region
        // Predicated region
        $region41: #{tpu_custom_call.1} parent=39 // pred_check
          %p242 = pneg %p37
        $region42: #{tpu_custom_call.1} parent=39 // pred_check_branch
          %244 = sbr.rel (%p242) target = $region44
        $region43: #{tpu_custom_call.1} parent=39 // pred_region
          %p245 = scmp.lt.s32.totalorder %s17, 1
          %s246 = scalar_select %p245, %s17, 1
          %s247 = smul.addr %s246, 2
          %s248 = smul.addr %s247, 8
          %s249 = scalar_lea.vmem %s0, %s248
        $region44: #{tpu_custom_call.1} parent=39 // pred_fallthru
          _
      $region40: #{tpu_custom_call.1} parent=5 // pred_fallthru
        _
      %p250 = scmp.le.s32.totalorder 1, %s17
      %p251 = scmp.lt.s32.totalorder %s17, 3
      %p252 = pnand %p250, %p251
      %p253 = pneg %p252
      // Predicated region
      $region45: #{tpu_custom_call.1} parent=5 // pred_check
        _
      $region46: #{tpu_custom_call.1} parent=5 // pred_check_branch
        %255 = sbr.rel (%p252) target = $region48
      $region47: #{tpu_custom_call.1} parent=5 // pred_region
        %s256 = ssub.s32 %s17, 1
        // Predicated region
        $region49: #{tpu_custom_call.1} parent=47 // pred_check
          %p257 = pneg %p106
        $region50: #{tpu_custom_call.1} parent=47 // pred_check_branch
          %259 = sbr.rel (%p257) target = $region52
        $region51: #{tpu_custom_call.1} parent=47 // pred_region
          %260 = dma.done [#allocation5], 2048
        $region52: #{tpu_custom_call.1} parent=47 // pred_fallthru
          _
        %p261 = scmp.lt.s32.totalorder %s22, 1
        %s262 = scalar_select %p261, %s22, 1
        %s263 = smul.addr %s262, 2
        %s264 = smul.addr %s263, 8
        %s265 = scalar_lea.vmem %s0, %s264
        %p266 = pneg %p43
        %p267 = pneg %p40
        %p268 = pneg %p64
        %p269 = pneg %p61
        %p270 = pneg %p85
        %p271 = pneg %p82
        %p272 = pneg %p106
        %p273 = pneg %p103
        %p274 = pneg %p127
        %p275 = pneg %p124
        %p276 = pneg %p148
        %p277 = pneg %p145
        %p278 = pneg %p169
        %p279 = pneg %p166
        %p280 = pneg %p195
        %p281 = pneg %p192
        %s282 = sand.u32 %s182, 1
        %s283 = scalar_lea.sflag [#allocation6], %s282
        %s284 = sand.u32 %s182, 1
        %s285 = smul.addr %s284, 8
        %s286 = scalar_lea.vmem [#allocation7], %s285
        %p287 = scmp.lt.s32.totalorder %s22, 1
        %s288 = scalar_select %p287, %s22, 1
        %s289 = smul.addr %s288, 2
        %s290 = smul.addr %s289, 8
        %s291 = scalar_lea.vmem %s0, %s290
        %292 = vst [vmem:[#allocation2] sm:$0xff] 0.0
        %293 = vst [vmem:[#allocation2 + $0x20] sm:$0xff] 0.0
        %294 = vst [vmem:[#allocation2 + $0x40] sm:$0xff] 0.0
        %295 = vst [vmem:[#allocation2 + $0x60] sm:$0xff] 0.0
        %296 = vst [vmem:[#allocation2 + $0x18] sm:$0xff] 0.0
        %297 = vst [vmem:[#allocation2 + $0x38] sm:$0xff] 0.0
        %298 = vst [vmem:[#allocation2 + $0x58] sm:$0xff] 0.0
        %299 = vst [vmem:[#allocation2 + $0x78] sm:$0xff] 0.0
        %v300 = vlaneseq
        %v301 = vand.u32 %v300, 127
        %v302 = vadd.s32 %v301, 128
        %vm303 = vcmp.lt.s32.totalorder %v301, 0
        %v304 = vsub.s32 0, %v301
        %v305 = vsel %vm303, %v304, %v301
        %v306 = vshrl.u32 %v305, 4
        %v307 = vand.u32 %v305, 15
        %v308 = vsub.s32 0, %v307
        %v309 = vsel %vm303, %v308, %v307
        %vm310 = vcmp.lt.s32.totalorder %v302, 0
        %v311 = vsub.s32 0, %v302
        %v312 = vsel %vm310, %v311, %v302
        %v313 = vshrl.u32 %v312, 4
        %v314 = vand.u32 %v312, 15
        %v315 = vsub.s32 0, %v314
        %v316 = vsel %vm310, %v315, %v314
        %vm317 = vcmp.ne.s32.totalorder %v309, 0
        %vm318 = vcmp.ne.s32.totalorder %v316, 0
        %vm319 = vcmp.lt.s32.totalorder %v309, 0
        %vm320 = vcmp.lt.s32.totalorder %v316, 0
        %vm321 = vmand %vm319, %vm317
        %vm322 = vmand %vm320, %vm318
        %v323 = vadd.s32 %v309, 16
        %v324 = vadd.s32 %v316, 16
        %v325 = vsel %vm321, %v323, %v309
        %v326 = vsel %vm322, %v324, %v316
        %v327 = vadd.s32 %v325, 4294967293
        %v328 = vadd.s32 %v326, 4294967293
        %vm329 = vcmp.ge.s32.totalorder %v327, 0
        %vm330 = vcmp.ge.s32.totalorder %v328, 0
        %vm331 = vcmp.lt.s32.totalorder %v327, 16
        %vm332 = vcmp.lt.s32.totalorder %v328, 16
        %vm333 = vmand %vm329, %vm331
        %vm334 = vmand %vm330, %vm332
        %v335 = vadd.s32 %v325, 4294967294
        %v336 = vadd.s32 %v326, 4294967294
        %vm337 = vcmp.ge.s32.totalorder %v335, 0
        %vm338 = vcmp.ge.s32.totalorder %v336, 0
        %vm339 = vcmp.lt.s32.totalorder %v335, 16
        %vm340 = vcmp.lt.s32.totalorder %v336, 16
        %vm341 = vmand %vm337, %vm339
        %vm342 = vmand %vm338, %vm340
        %v343 = vadd.s32 %v325, 4294967295
        %v344 = vadd.s32 %v326, 4294967295
        %vm345 = vcmp.ge.s32.totalorder %v343, 0
        %vm346 = vcmp.ge.s32.totalorder %v344, 0
        %vm347 = vcmp.lt.s32.totalorder %v343, 16
        %vm348 = vcmp.lt.s32.totalorder %v344, 16
        %vm349 = vmand %vm345, %vm347
        %vm350 = vmand %vm346, %vm348
        %v351 = vadd.s32 %v325, 1
        %v352 = vadd.s32 %v326, 1
        %vm353 = vcmp.ge.s32.totalorder %v351, 0
        %vm354 = vcmp.ge.s32.totalorder %v352, 0
        %vm355 = vcmp.lt.s32.totalorder %v351, 16
        %vm356 = vcmp.lt.s32.totalorder %v352, 16
        %vm357 = vmand %vm353, %vm355
        %vm358 = vmand %vm354, %vm356
        %v359 = vadd.s32 %v325, 2
        %v360 = vadd.s32 %v326, 2
        %vm361 = vcmp.ge.s32.totalorder %v359, 0
        %vm362 = vcmp.ge.s32.totalorder %v360, 0
        %vm363 = vcmp.lt.s32.totalorder %v359, 16
        %vm364 = vcmp.lt.s32.totalorder %v360, 16
        %vm365 = vmand %vm361, %vm363
        %vm366 = vmand %vm362, %vm364
        %v367 = vadd.s32 %v325, 3
        %v368 = vadd.s32 %v326, 3
        %vm369 = vcmp.ge.s32.totalorder %v367, 0
        %vm370 = vcmp.ge.s32.totalorder %v368, 0
        %vm371 = vcmp.lt.s32.totalorder %v367, 16
        %vm372 = vcmp.lt.s32.totalorder %v368, 16
        %vm373 = vmand %vm369, %vm371
        %vm374 = vmand %vm370, %vm372
        %v375 = vld [vmem:[%s1] sm:$0xff]
        %v376 = vld [vmem:[%s1 + $0x8] sm:$0xff]
        %v377 = vld [vmem:[%s1 + $0x10] sm:$0xff]
        %v378 = vld [vmem:[%s1 + $0x18] sm:$0xff]
        %v379 = vld [vmem:[%s291] sm:$0xff]
        %v380 = vld [vmem:[%s291 + $0x8] sm:$0xff]
        %v381 = vld [vmem:[%s2] sm:$0xff]
        %v382 = vld [vmem:[%s2 + $0x8] sm:$0xff]
        %v383 = vld [vmem:[%s2 + $0x10] sm:$0xff]
        %v384 = vld [vmem:[%s2 + $0x18] sm:$0xff]
        %386 = vset.pattern.permute.xlu0 0
        %387 = vperm.xlu0 %386, %v381
        %v388 = vpop.permute.xlu0 %387
        %391 = vset.pattern.permute.xlu0 0
        %392 = vperm.xlu0 %391, %v382
        %v393 = vpop.permute.xlu0 %392
        %396 = vset.pattern.permute.xlu0 0
        %397 = vperm.xlu0 %396, %v383
        %v398 = vpop.permute.xlu0 %397
        %401 = vset.pattern.permute.xlu0 0
        %402 = vperm.xlu0 %401, %v384
        %v403 = vpop.permute.xlu0 %402
        %vm405 = vcmask 64512
        %v407 = vsel %vm405, %v375, 0
        %v410 = vsel %vm405, %v376, 0
        %v413 = vsel %vm405, %v377, 0
        %v416 = vsel %vm405, %v378, 0
        %418 = vmatprep.subr.mxu0 %v380
        %419 = vmatpush1.msra.mxu0 %v379
        %420 = vmatprep.subr.mxu0 0.0
        %421 = vmatpush1.msra.mxu0 0.0
        %422 = vmatprep.subr.mxu0 0.0
        %423 = vmatpush1.msra.mxu0 0.0
        %424 = vmatprep.subr.mxu0 0.0
        %425 = vmatpush1.msra.mxu0 0.0
        %426 = vmatprep.subr.mxu0 0.0
        %427 = vmatpush1.msra.mxu0 0.0
        %428 = vmatprep.subr.mxu0 0.0
        %429 = vmatpush1.msra.mxu0 0.0
        %430 = vmatprep.subr.mxu0 0.0
        %431 = vmatpush1.msra.mxu0 0.0
        %432 = vmatprep.subr.mxu0 0.0
        %433 = vmatpush1.msra.mxu0 0.0
        %434 = vmatprep.subr.mxu0 0.0
        %435 = vmatpush1.msra.mxu0 0.0
        %436 = vmatprep.subr.mxu0 0.0
        %437 = vmatpush1.msra.mxu0 0.0
        %438 = vmatprep.subr.mxu0 0.0
        %439 = vmatpush1.msra.mxu0 0.0
        %440 = vmatprep.subr.mxu0 0.0
        %441 = vmatpush1.msra.mxu0 0.0
        %442 = vmatprep.subr.mxu0 0.0
        %443 = vmatpush1.msra.mxu0 0.0
        %444 = vmatprep.subr.mxu0 0.0
        %445 = vmatpush1.msra.mxu0 0.0
        %446 = vmatprep.subr.mxu0 0.0
        %447 = vmatpush1.msra.mxu0 0.0
        %448 = vmatprep.subr.mxu0 0.0
        %449 = vmatpush1.msra.mxu0 0.0
        %450 = vmatprep.subr.mxu0 0.0
        %451 = vmatpush1.msra.mxu0 0.0
        %452 = vmatprep.subr.mxu0 0.0
        %453 = vmatpush1.msra.mxu0 0.0
        %454 = vmatprep.subr.mxu0 0.0
        %455 = vmatpush1.msra.mxu0 0.0
        %456 = vmatprep.subr.mxu0 0.0
        %457 = vmatpush1.msra.mxu0 0.0
        %458 = vmatprep.subr.mxu0 0.0
        %459 = vmatpush1.msra.mxu0 0.0
        %460 = vmatprep.subr.mxu0 0.0
        %461 = vmatpush1.msra.mxu0 0.0
        %462 = vmatprep.subr.mxu0 0.0
        %463 = vmatpush1.msra.mxu0 0.0
        %464 = vmatprep.subr.mxu0 0.0
        %465 = vmatpush1.msra.mxu0 0.0
        %466 = vmatprep.subr.mxu0 0.0
        %467 = vmatpush1.msra.mxu0 0.0
        %468 = vmatprep.subr.mxu0 0.0
        %469 = vmatpush1.msra.mxu0 0.0
        %470 = vmatprep.subr.mxu0 0.0
        %471 = vmatpush1.msra.mxu0 0.0
        %472 = vmatprep.subr.mxu0 0.0
        %473 = vmatpush1.msra.mxu0 0.0
        %474 = vmatprep.subr.mxu0 0.0
        %475 = vmatpush1.msra.mxu0 0.0
        %476 = vmatprep.subr.mxu0 0.0
        %477 = vmatpush1.msra.mxu0 0.0
        %478 = vmatprep.subr.mxu0 0.0
        %479 = vmatpush1.msra.mxu0 0.0
        %480 = vmatprep.subr.mxu0 0.0
        %481 = vmatpush1.msra.mxu0 0.0
        %482 = vmatprep.mubr.f32.mxu0 0.0
        %483 = vmatmul.mubr.f32.gmra.mrb[0].mxu0 %v407
        %v484 = vpop.f32.mrb[0].mxu0
        %v485 = vadd.f32 %v388, %v484
        %v486 = vpop.f32.mrb[0].mxu0
        %v487 = vadd.f32 %v388, %v486
        %488 = vmatprep.mubr.f32.mxu0 0.0
        %489 = vmatmul.mubr.f32.gmra.mrb[0].mxu0 %v410
        %v490 = vpop.f32.mrb[0].mxu0
        %v491 = vadd.f32 %v393, %v490
        %v492 = vpop.f32.mrb[0].mxu0
        %v493 = vadd.f32 %v393, %v492
        %494 = vmatprep.mubr.f32.mxu0 0.0
        %495 = vmatmul.mubr.f32.gmra.mrb[0].mxu0 %v413
        %v496 = vpop.f32.mrb[0].mxu0
        %v497 = vadd.f32 %v398, %v496
        %v498 = vpop.f32.mrb[0].mxu0
        %v499 = vadd.f32 %v398, %v498
        %500 = vmatprep.mubr.f32.mxu0 0.0
        %501 = vmatmul.mubr.f32.gmra.mrb[0].mxu0 %v416
        %v502 = vpop.f32.mrb[0].mxu0
        %v503 = vadd.f32 %v403, %v502
        %v504 = vpop.f32.mrb[0].mxu0
        %v505 = vadd.f32 %v403, %v504
        %506 = vdwg.mxu0
        %v507 = vmax.f32 %v485, 0.0
        %v508 = vmax.f32 %v487, 0.0
        %v509 = vmax.f32 %v491, 0.0
        %v510 = vmax.f32 %v493, 0.0
        %v511 = vmax.f32 %v497, 0.0
        %v512 = vmax.f32 %v499, 0.0
        %v513 = vmax.f32 %v503, 0.0
        %v514 = vmax.f32 %v505, 0.0
        %515 = vst [vmem:[#allocation2 + $0x8] sm:$0xff] %v507
        %516 = vst [vmem:[#allocation2 + $0x10] sm:$0xff] %v508
        %517 = vst [vmem:[#allocation2 + $0x28] sm:$0xff] %v509
        %518 = vst [vmem:[#allocation2 + $0x30] sm:$0xff] %v510
        %519 = vst [vmem:[#allocation2 + $0x48] sm:$0xff] %v511
        %520 = vst [vmem:[#allocation2 + $0x50] sm:$0xff] %v512
        %521 = vst [vmem:[#allocation2 + $0x68] sm:$0xff] %v513
        %522 = vst [vmem:[#allocation2 + $0x70] sm:$0xff] %v514
        %523 = vst [vmem:[#allocation3] sm:$0xff] %v507
        %524 = vst [vmem:[#allocation3 + $0x8] sm:$0xff] %v508
        %525 = vst [vmem:[#allocation3 + $0x10] sm:$0xff] %v509
        %526 = vst [vmem:[#allocation3 + $0x18] sm:$0xff] %v510
        %527 = vst [vmem:[#allocation3 + $0x20] sm:$0xff] %v511
        %528 = vst [vmem:[#allocation3 + $0x28] sm:$0xff] %v512
        %529 = vst [vmem:[#allocation3 + $0x30] sm:$0xff] %v513
        %530 = vst [vmem:[#allocation3 + $0x38] sm:$0xff] %v514
        %v531 = vld [vmem:[#allocation2] sm:$0xff]
        %v532 = vld [vmem:[#allocation2 + $0x8] sm:$0xff]
        %v533 = vld [vmem:[#allocation2 + $0x10] sm:$0xff]
        %v534 = vld [vmem:[#allocation2 + $0x20] sm:$0xff]
        %v535 = vld [vmem:[#allocation2 + $0x28] sm:$0xff]
        %v536 = vld [vmem:[#allocation2 + $0x30] sm:$0xff]
        %v537 = vld [vmem:[#allocation2 + $0x40] sm:$0xff]
        %v538 = vld [vmem:[#allocation2 + $0x48] sm:$0xff]
        %v539 = vld [vmem:[#allocation2 + $0x50] sm:$0xff]
        %v540 = vld [vmem:[#allocation2 + $0x60] sm:$0xff]
        %v541 = vld [vmem:[#allocation2 + $0x68] sm:$0xff]
        %v542 = vld [vmem:[#allocation2 + $0x70] sm:$0xff]
        %555 = vrot.lane.b32.xlu0 %v531, 48
        %v556 = vpop.permute.xlu0 %555
        %557 = vrot.lane.b32.xlu0 %v532, 48
        %v558 = vpop.permute.xlu0 %557
        %559 = vrot.lane.b32.xlu0 %v533, 48
        %v560 = vpop.permute.xlu0 %559
        %561 = vrot.lane.b32.xlu0 %v534, 48
        %v562 = vpop.permute.xlu0 %561
        %563 = vrot.lane.b32.xlu0 %v535, 48
        %v564 = vpop.permute.xlu0 %563
        %565 = vrot.lane.b32.xlu0 %v536, 48
        %v566 = vpop.permute.xlu0 %565
        %567 = vrot.lane.b32.xlu0 %v537, 48
        %v568 = vpop.permute.xlu0 %567
        %569 = vrot.lane.b32.xlu0 %v538, 48
        %v570 = vpop.permute.xlu0 %569
        %571 = vrot.lane.b32.xlu0 %v539, 48
        %v572 = vpop.permute.xlu0 %571
        %573 = vrot.lane.b32.xlu0 %v540, 48
        %v574 = vpop.permute.xlu0 %573
        %575 = vrot.lane.b32.xlu0 %v541, 48
        %v576 = vpop.permute.xlu0 %575
        %577 = vrot.lane.b32.xlu0 %v542, 48
        %v578 = vpop.permute.xlu0 %577
        %vm579 = vcmask 392192
        %v580 = vsel %vm579, %v556, %v558
        %v581 = vsel %vm579, %v558, %v560
        %v582 = vsel %vm579, %v562, %v564
        %v583 = vsel %vm579, %v564, %v566
        %v584 = vsel %vm579, %v568, %v570
        %v585 = vsel %vm579, %v570, %v572
        %v586 = vsel %vm579, %v574, %v576
        %v587 = vsel %vm579, %v576, %v578
        %596 = vst [vmem:[#allocation3 + $0x40] sm:$0xff] %v580
        %597 = vst [vmem:[#allocation3 + $0x48] sm:$0xff] %v581
        %598 = vst [vmem:[#allocation3 + $0x50] sm:$0xff] %v582
        %599 = vst [vmem:[#allocation3 + $0x58] sm:$0xff] %v583
        %600 = vst [vmem:[#allocation3 + $0x60] sm:$0xff] %v584
        %601 = vst [vmem:[#allocation3 + $0x68] sm:$0xff] %v585
        %602 = vst [vmem:[#allocation3 + $0x70] sm:$0xff] %v586
        %603 = vst [vmem:[#allocation3 + $0x78] sm:$0xff] %v587
        %v604 = vld [vmem:[#allocation2] sm:$0xff]
        %v605 = vld [vmem:[#allocation2 + $0x8] sm:$0xff]
        %v606 = vld [vmem:[#allocation2 + $0x10] sm:$0xff]
        %v607 = vld [vmem:[#allocation2 + $0x20] sm:$0xff]
        %v608 = vld [vmem:[#allocation2 + $0x28] sm:$0xff]
        %v609 = vld [vmem:[#allocation2 + $0x30] sm:$0xff]
        %v610 = vld [vmem:[#allocation2 + $0x40] sm:$0xff]
        %v611 = vld [vmem:[#allocation2 + $0x48] sm:$0xff]
        %v612 = vld [vmem:[#allocation2 + $0x50] sm:$0xff]
        %v613 = vld [vmem:[#allocation2 + $0x60] sm:$0xff]
        %v614 = vld [vmem:[#allocation2 + $0x68] sm:$0xff]
        %v615 = vld [vmem:[#allocation2 + $0x70] sm:$0xff]
        %v616 = vsel %vm333, 1, 0
        %v617 = vsel %vm334, 1, 0
        %vm618 = vcmp.eq.s32.totalorder %v616, 1
        %vm619 = vcmp.eq.s32.totalorder %v617, 1
        %632 = vrot.lane.b32.xlu0 %v604, 3
        %v633 = vpop.permute.xlu0 %632
        %634 = vrot.lane.b32.xlu0 %v605, 3
        %v635 = vpop.permute.xlu0 %634
        %636 = vrot.lane.b32.xlu0 %v606, 3
        %v637 = vpop.permute.xlu0 %636
        %638 = vrot.lane.b32.xlu0 %v607, 3
        %v639 = vpop.permute.xlu0 %638
        %640 = vrot.lane.b32.xlu0 %v608, 3
        %v641 = vpop.permute.xlu0 %640
        %642 = vrot.lane.b32.xlu0 %v609, 3
        %v643 = vpop.permute.xlu0 %642
        %644 = vrot.lane.b32.xlu0 %v610, 3
        %v645 = vpop.permute.xlu0 %644
        %646 = vrot.lane.b32.xlu0 %v611, 3
        %v647 = vpop.permute.xlu0 %646
        %648 = vrot.lane.b32.xlu0 %v612, 3
        %v649 = vpop.permute.xlu0 %648
        %650 = vrot.lane.b32.xlu0 %v613, 3
        %v651 = vpop.permute.xlu0 %650
        %652 = vrot.lane.b32.xlu0 %v614, 3
        %v653 = vpop.permute.xlu0 %652
        %654 = vrot.lane.b32.xlu0 %v615, 3
        %v655 = vpop.permute.xlu0 %654
        %vm656 = vcmask 23552
        %v657 = vsel %vm656, %v633, %v635
        %v658 = vsel %vm656, %v635, %v637
        %v659 = vsel %vm656, %v639, %v641
        %v660 = vsel %vm656, %v641, %v643
        %v661 = vsel %vm656, %v645, %v647
        %v662 = vsel %vm656, %v647, %v649
        %v663 = vsel %vm656, %v651, %v653
        %v664 = vsel %vm656, %v653, %v655
        %v673 = vsel %vm618, %v657, 0.0
        %v674 = vsel %vm619, %v658, 0.0
        %v675 = vsel %vm618, %v659, 0.0
        %v676 = vsel %vm619, %v660, 0.0
        %v677 = vsel %vm618, %v661, 0.0
        %v678 = vsel %vm619, %v662, 0.0
        %v679 = vsel %vm618, %v663, 0.0
        %v680 = vsel %vm619, %v664, 0.0
        %681 = vst [vmem:[#allocation3 + $0x1c0] sm:$0xff] %v673
        %682 = vst [vmem:[#allocation3 + $0x1c8] sm:$0xff] %v674
        %683 = vst [vmem:[#allocation3 + $0x1d0] sm:$0xff] %v675
        %684 = vst [vmem:[#allocation3 + $0x1d8] sm:$0xff] %v676
        %685 = vst [vmem:[#allocation3 + $0x1e0] sm:$0xff] %v677
        %686 = vst [vmem:[#allocation3 + $0x1e8] sm:$0xff] %v678
        %687 = vst [vmem:[#allocation3 + $0x1f0] sm:$0xff] %v679
        %688 = vst [vmem:[#allocation3 + $0x1f8] sm:$0xff] %v680
        %v689 = vld [vmem:[#allocation2] sm:$0xff]
        %v690 = vld [vmem:[#allocation2 + $0x8] sm:$0xff]
        %v691 = vld [vmem:[#allocation2 + $0x10] sm:$0xff]
        %v692 = vld [vmem:[#allocation2 + $0x20] sm:$0xff]
        %v693 = vld [vmem:[#allocation2 + $0x28] sm:$0xff]
        %v694 = vld [vmem:[#allocation2 + $0x30] sm:$0xff]
        %v695 = vld [vmem:[#allocation2 + $0x40] sm:$0xff]
        %v696 = vld [vmem:[#allocation2 + $0x48] sm:$0xff]
        %v697 = vld [vmem:[#allocation2 + $0x50] sm:$0xff]
        %v698 = vld [vmem:[#allocation2 + $0x60] sm:$0xff]
        %v699 = vld [vmem:[#allocation2 + $0x68] sm:$0xff]
        %v700 = vld [vmem:[#allocation2 + $0x70] sm:$0xff]
        %713 = vrot.lane.b32.xlu0 %v689, 32
        %v714 = vpop.permute.xlu0 %713
        %715 = vrot.lane.b32.xlu0 %v690, 32
        %v716 = vpop.permute.xlu0 %715
        %717 = vrot.lane.b32.xlu0 %v691, 32
        %v718 = vpop.permute.xlu0 %717
        %719 = vrot.lane.b32.xlu0 %v692, 32
        %v720 = vpop.permute.xlu0 %719
        %721 = vrot.lane.b32.xlu0 %v693, 32
        %v722 = vpop.permute.xlu0 %721
        %723 = vrot.lane.b32.xlu0 %v694, 32
        %v724 = vpop.permute.xlu0 %723
        %725 = vrot.lane.b32.xlu0 %v695, 32
        %v726 = vpop.permute.xlu0 %725
        %727 = vrot.lane.b32.xlu0 %v696, 32
        %v728 = vpop.permute.xlu0 %727
        %729 = vrot.lane.b32.xlu0 %v697, 32
        %v730 = vpop.permute.xlu0 %729
        %731 = vrot.lane.b32.xlu0 %v698, 32
        %v732 = vpop.permute.xlu0 %731
        %733 = vrot.lane.b32.xlu0 %v699, 32
        %v734 = vpop.permute.xlu0 %733
        %735 = vrot.lane.b32.xlu0 %v700, 32
        %v736 = vpop.permute.xlu0 %735
        %vm737 = vcmask 261120
        %v738 = vsel %vm737, %v714, %v716
        %v739 = vsel %vm737, %v716, %v718
        %v740 = vsel %vm737, %v720, %v722
        %v741 = vsel %vm737, %v722, %v724
        %v742 = vsel %vm737, %v726, %v728
        %v743 = vsel %vm737, %v728, %v730
        %v744 = vsel %vm737, %v732, %v734
        %v745 = vsel %vm737, %v734, %v736
        %754 = vst [vmem:[#allocation3 + $0x80] sm:$0xff] %v738
        %755 = vst [vmem:[#allocation3 + $0x88] sm:$0xff] %v739
        %756 = vst [vmem:[#allocation3 + $0x90] sm:$0xff] %v740
        %757 = vst [vmem:[#allocation3 + $0x98] sm:$0xff] %v741
        %758 = vst [vmem:[#allocation3 + $0xa0] sm:$0xff] %v742
        %759 = vst [vmem:[#allocation3 + $0xa8] sm:$0xff] %v743
        %760 = vst [vmem:[#allocation3 + $0xb0] sm:$0xff] %v744
        %761 = vst [vmem:[#allocation3 + $0xb8] sm:$0xff] %v745
        %v762 = vld [vmem:[#allocation2] sm:$0xff]
        %v763 = vld [vmem:[#allocation2 + $0x8] sm:$0xff]
        %v764 = vld [vmem:[#allocation2 + $0x10] sm:$0xff]
        %v765 = vld [vmem:[#allocation2 + $0x20] sm:$0xff]
        %v766 = vld [vmem:[#allocation2 + $0x28] sm:$0xff]
        %v767 = vld [vmem:[#allocation2 + $0x30] sm:$0xff]
        %v768 = vld [vmem:[#allocation2 + $0x40] sm:$0xff]
        %v769 = vld [vmem:[#allocation2 + $0x48] sm:$0xff]
        %v770 = vld [vmem:[#allocation2 + $0x50] sm:$0xff]
        %v771 = vld [vmem:[#allocation2 + $0x60] sm:$0xff]
        %v772 = vld [vmem:[#allocation2 + $0x68] sm:$0xff]
        %v773 = vld [vmem:[#allocation2 + $0x70] sm:$0xff]
        %v774 = vsel %vm341, 1, 0
        %v775 = vsel %vm342, 1, 0
        %vm776 = vcmp.eq.s32.totalorder %v774, 1
        %vm777 = vcmp.eq.s32.totalorder %v775, 1
        %790 = vrot.lane.b32.xlu0 %v762, 2
        %v791 = vpop.permute.xlu0 %790
        %792 = vrot.lane.b32.xlu0 %v763, 2
        %v793 = vpop.permute.xlu0 %792
        %794 = vrot.lane.b32.xlu0 %v764, 2
        %v795 = vpop.permute.xlu0 %794
        %796 = vrot.lane.b32.xlu0 %v765, 2
        %v797 = vpop.permute.xlu0 %796
        %798 = vrot.lane.b32.xlu0 %v766, 2
        %v799 = vpop.permute.xlu0 %798
        %800 = vrot.lane.b32.xlu0 %v767, 2
        %v801 = vpop.permute.xlu0 %800
        %802 = vrot.lane.b32.xlu0 %v768, 2
        %v803 = vpop.permute.xlu0 %802
        %804 = vrot.lane.b32.xlu0 %v769, 2
        %v805 = vpop.permute.xlu0 %804
        %806 = vrot.lane.b32.xlu0 %v770, 2
        %v807 = vpop.permute.xlu0 %806
        %808 = vrot.lane.b32.xlu0 %v771, 2
        %v809 = vpop.permute.xlu0 %808
        %810 = vrot.lane.b32.xlu0 %v772, 2
        %v811 = vpop.permute.xlu0 %810
        %812 = vrot.lane.b32.xlu0 %v773, 2
        %v813 = vpop.permute.xlu0 %812
        %vm814 = vcmask 15360
        %v815 = vsel %vm814, %v791, %v793
        %v816 = vsel %vm814, %v793, %v795
        %v817 = vsel %vm814, %v797, %v799
        %v818 = vsel %vm814, %v799, %v801
        %v819 = vsel %vm814, %v803, %v805
        %v820 = vsel %vm814, %v805, %v807
        %v821 = vsel %vm814, %v809, %v811
        %v822 = vsel %vm814, %v811, %v813
        %v831 = vsel %vm776, %v815, 0.0
        %v832 = vsel %vm777, %v816, 0.0
        %v833 = vsel %vm776, %v817, 0.0
        %v834 = vsel %vm777, %v818, 0.0
        %v835 = vsel %vm776, %v819, 0.0
        %v836 = vsel %vm777, %v820, 0.0
        %v837 = vsel %vm776, %v821, 0.0
        %v838 = vsel %vm777, %v822, 0.0
        %839 = vst [vmem:[#allocation3 + $0x200] sm:$0xff] %v831
        %840 = vst [vmem:[#allocation3 + $0x208] sm:$0xff] %v832
        %841 = vst [vmem:[#allocation3 + $0x210] sm:$0xff] %v833
        %842 = vst [vmem:[#allocation3 + $0x218] sm:$0xff] %v834
        %843 = vst [vmem:[#allocation3 + $0x220] sm:$0xff] %v835
        %844 = vst [vmem:[#allocation3 + $0x228] sm:$0xff] %v836
        %845 = vst [vmem:[#allocation3 + $0x230] sm:$0xff] %v837
        %846 = vst [vmem:[#allocation3 + $0x238] sm:$0xff] %v838
        %v847 = vld [vmem:[#allocation2] sm:$0xff]
        %v848 = vld [vmem:[#allocation2 + $0x8] sm:$0xff]
        %v849 = vld [vmem:[#allocation2 + $0x10] sm:$0xff]
        %v850 = vld [vmem:[#allocation2 + $0x20] sm:$0xff]
        %v851 = vld [vmem:[#allocation2 + $0x28] sm:$0xff]
        %v852 = vld [vmem:[#allocation2 + $0x30] sm:$0xff]
        %v853 = vld [vmem:[#allocation2 + $0x40] sm:$0xff]
        %v854 = vld [vmem:[#allocation2 + $0x48] sm:$0xff]
        %v855 = vld [vmem:[#allocation2 + $0x50] sm:$0xff]
        %v856 = vld [vmem:[#allocation2 + $0x60] sm:$0xff]
        %v857 = vld [vmem:[#allocation2 + $0x68] sm:$0xff]
        %v858 = vld [vmem:[#allocation2 + $0x70] sm:$0xff]
        %871 = vrot.lane.b32.xlu0 %v847, 16
        %v872 = vpop.permute.xlu0 %871
        %873 = vrot.lane.b32.xlu0 %v848, 16
        %v874 = vpop.permute.xlu0 %873
        %875 = vrot.lane.b32.xlu0 %v849, 16
        %v876 = vpop.permute.xlu0 %875
        %877 = vrot.lane.b32.xlu0 %v850, 16
        %v878 = vpop.permute.xlu0 %877
        %879 = vrot.lane.b32.xlu0 %v851, 16
        %v880 = vpop.permute.xlu0 %879
        %881 = vrot.lane.b32.xlu0 %v852, 16
        %v882 = vpop.permute.xlu0 %881
        %883 = vrot.lane.b32.xlu0 %v853, 16
        %v884 = vpop.permute.xlu0 %883
        %885 = vrot.lane.b32.xlu0 %v854, 16
        %v886 = vpop.permute.xlu0 %885
        %887 = vrot.lane.b32.xlu0 %v855, 16
        %v888 = vpop.permute.xlu0 %887
        %889 = vrot.lane.b32.xlu0 %v856, 16
        %v890 = vpop.permute.xlu0 %889
        %891 = vrot.lane.b32.xlu0 %v857, 16
        %v892 = vpop.permute.xlu0 %891
        %893 = vrot.lane.b32.xlu0 %v858, 16
        %v894 = vpop.permute.xlu0 %893
        %vm895 = vcmask 130048
        %v896 = vsel %vm895, %v872, %v874
        %v897 = vsel %vm895, %v874, %v876
        %v898 = vsel %vm895, %v878, %v880
        %v899 = vsel %vm895, %v880, %v882
        %v900 = vsel %vm895, %v884, %v886
        %v901 = vsel %vm895, %v886, %v888
        %v902 = vsel %vm895, %v890, %v892
        %v903 = vsel %vm895, %v892, %v894
        %912 = vst [vmem:[#allocation3 + $0xc0] sm:$0xff] %v896
        %913 = vst [vmem:[#allocation3 + $0xc8] sm:$0xff] %v897
        %914 = vst [vmem:[#allocation3 + $0xd0] sm:$0xff] %v898
        %915 = vst [vmem:[#allocation3 + $0xd8] sm:$0xff] %v899
        %916 = vst [vmem:[#allocation3 + $0xe0] sm:$0xff] %v900
        %917 = vst [vmem:[#allocation3 + $0xe8] sm:$0xff] %v901
        %918 = vst [vmem:[#allocation3 + $0xf0] sm:$0xff] %v902
        %919 = vst [vmem:[#allocation3 + $0xf8] sm:$0xff] %v903
        %v920 = vld [vmem:[#allocation2] sm:$0xff]
        %v921 = vld [vmem:[#allocation2 + $0x8] sm:$0xff]
        %v922 = vld [vmem:[#allocation2 + $0x10] sm:$0xff]
        %v923 = vld [vmem:[#allocation2 + $0x20] sm:$0xff]
        %v924 = vld [vmem:[#allocation2 + $0x28] sm:$0xff]
        %v925 = vld [vmem:[#allocation2 + $0x30] sm:$0xff]
        %v926 = vld [vmem:[#allocation2 + $0x40] sm:$0xff]
        %v927 = vld [vmem:[#allocation2 + $0x48] sm:$0xff]
        %v928 = vld [vmem:[#allocation2 + $0x50] sm:$0xff]
        %v929 = vld [vmem:[#allocation2 + $0x60] sm:$0xff]
        %v930 = vld [vmem:[#allocation2 + $0x68] sm:$0xff]
        %v931 = vld [vmem:[#allocation2 + $0x70] sm:$0xff]
        %v932 = vsel %vm349, 1, 0
        %v933 = vsel %vm350, 1, 0
        %vm934 = vcmp.eq.s32.totalorder %v932, 1
        %vm935 = vcmp.eq.s32.totalorder %v933, 1
        %948 = vrot.lane.b32.xlu0 %v920, 1
        %v949 = vpop.permute.xlu0 %948
        %950 = vrot.lane.b32.xlu0 %v921, 1
        %v951 = vpop.permute.xlu0 %950
        %952 = vrot.lane.b32.xlu0 %v922, 1
        %v953 = vpop.permute.xlu0 %952
        %954 = vrot.lane.b32.xlu0 %v923, 1
        %v955 = vpop.permute.xlu0 %954
        %956 = vrot.lane.b32.xlu0 %v924, 1
        %v957 = vpop.permute.xlu0 %956
        %958 = vrot.lane.b32.xlu0 %v925, 1
        %v959 = vpop.permute.xlu0 %958
        %960 = vrot.lane.b32.xlu0 %v926, 1
        %v961 = vpop.permute.xlu0 %960
        %962 = vrot.lane.b32.xlu0 %v927, 1
        %v963 = vpop.permute.xlu0 %962
        %964 = vrot.lane.b32.xlu0 %v928, 1
        %v965 = vpop.permute.xlu0 %964
        %966 = vrot.lane.b32.xlu0 %v929, 1
        %v967 = vpop.permute.xlu0 %966
        %968 = vrot.lane.b32.xlu0 %v930, 1
        %v969 = vpop.permute.xlu0 %968
        %970 = vrot.lane.b32.xlu0 %v931, 1
        %v971 = vpop.permute.xlu0 %970
        %vm972 = vcmask 7168
        %v973 = vsel %vm972, %v949, %v951
        %v974 = vsel %vm972, %v951, %v953
        %v975 = vsel %vm972, %v955, %v957
        %v976 = vsel %vm972, %v957, %v959
        %v977 = vsel %vm972, %v961, %v963
        %v978 = vsel %vm972, %v963, %v965
        %v979 = vsel %vm972, %v967, %v969
        %v980 = vsel %vm972, %v969, %v971
        %v989 = vsel %vm934, %v973, 0.0
        %v990 = vsel %vm935, %v974, 0.0
        %v991 = vsel %vm934, %v975, 0.0
        %v992 = vsel %vm935, %v976, 0.0
        %v993 = vsel %vm934, %v977, 0.0
        %v994 = vsel %vm935, %v978, 0.0
        %v995 = vsel %vm934, %v979, 0.0
        %v996 = vsel %vm935, %v980, 0.0
        %997 = vst [vmem:[#allocation3 + $0x240] sm:$0xff] %v989
        %998 = vst [vmem:[#allocation3 + $0x248] sm:$0xff] %v990
        %999 = vst [vmem:[#allocation3 + $0x250] sm:$0xff] %v991
        %1000 = vst [vmem:[#allocation3 + $0x258] sm:$0xff] %v992
        %1001 = vst [vmem:[#allocation3 + $0x260] sm:$0xff] %v993
        %1002 = vst [vmem:[#allocation3 + $0x268] sm:$0xff] %v994
        %1003 = vst [vmem:[#allocation3 + $0x270] sm:$0xff] %v995
        %1004 = vst [vmem:[#allocation3 + $0x278] sm:$0xff] %v996
        %v1005 = vld [vmem:[#allocation2 + $0x8] sm:$0xff]
        %v1006 = vld [vmem:[#allocation2 + $0x10] sm:$0xff]
        %v1007 = vld [vmem:[#allocation2 + $0x18] sm:$0xff]
        %v1008 = vld [vmem:[#allocation2 + $0x28] sm:$0xff]
        %v1009 = vld [vmem:[#allocation2 + $0x30] sm:$0xff]
        %v1010 = vld [vmem:[#allocation2 + $0x38] sm:$0xff]
        %v1011 = vld [vmem:[#allocation2 + $0x48] sm:$0xff]
        %v1012 = vld [vmem:[#allocation2 + $0x50] sm:$0xff]
        %v1013 = vld [vmem:[#allocation2 + $0x58] sm:$0xff]
        %v1014 = vld [vmem:[#allocation2 + $0x68] sm:$0xff]
        %v1015 = vld [vmem:[#allocation2 + $0x70] sm:$0xff]
        %v1016 = vld [vmem:[#allocation2 + $0x78] sm:$0xff]
        %1029 = vrot.lane.b32.xlu0 %v1005, 112
        %v1030 = vpop.permute.xlu0 %1029
        %1031 = vrot.lane.b32.xlu0 %v1006, 112
        %v1032 = vpop.permute.xlu0 %1031
        %1033 = vrot.lane.b32.xlu0 %v1007, 112
        %v1034 = vpop.permute.xlu0 %1033
        %1035 = vrot.lane.b32.xlu0 %v1008, 112
        %v1036 = vpop.permute.xlu0 %1035
        %1037 = vrot.lane.b32.xlu0 %v1009, 112
        %v1038 = vpop.permute.xlu0 %1037
        %1039 = vrot.lane.b32.xlu0 %v1010, 112
        %v1040 = vpop.permute.xlu0 %1039
        %1041 = vrot.lane.b32.xlu0 %v1011, 112
        %v1042 = vpop.permute.xlu0 %1041
        %1043 = vrot.lane.b32.xlu0 %v1012, 112
        %v1044 = vpop.permute.xlu0 %1043
        %1045 = vrot.lane.b32.xlu0 %v1013, 112
        %v1046 = vpop.permute.xlu0 %1045
        %1047 = vrot.lane.b32.xlu0 %v1014, 112
        %v1048 = vpop.permute.xlu0 %1047
        %1049 = vrot.lane.b32.xlu0 %v1015, 112
        %v1050 = vpop.permute.xlu0 %1049
        %1051 = vrot.lane.b32.xlu0 %v1016, 112
        %v1052 = vpop.permute.xlu0 %1051
        %vm1053 = vcmask 916480
        %v1054 = vsel %vm1053, %v1030, %v1032
        %v1055 = vsel %vm1053, %v1032, %v1034
        %v1056 = vsel %vm1053, %v1036, %v1038
        %v1057 = vsel %vm1053, %v1038, %v1040
        %v1058 = vsel %vm1053, %v1042, %v1044
        %v1059 = vsel %vm1053, %v1044, %v1046
        %v1060 = vsel %vm1053, %v1048, %v1050
        %v1061 = vsel %vm1053, %v1050, %v1052
        %1070 = vst [vmem:[#allocation3 + $0x100] sm:$0xff] %v1054
        %1071 = vst [vmem:[#allocation3 + $0x108] sm:$0xff] %v1055
        %1072 = vst [vmem:[#allocation3 + $0x110] sm:$0xff] %v1056
        %1073 = vst [vmem:[#allocation3 + $0x118] sm:$0xff] %v1057
        %1074 = vst [vmem:[#allocation3 + $0x120] sm:$0xff] %v1058
        %1075 = vst [vmem:[#allocation3 + $0x128] sm:$0xff] %v1059
        %1076 = vst [vmem:[#allocation3 + $0x130] sm:$0xff] %v1060
        %1077 = vst [vmem:[#allocation3 + $0x138] sm:$0xff] %v1061
        %v1078 = vld [vmem:[#allocation2 + $0x8] sm:$0xff]
        %v1079 = vld [vmem:[#allocation2 + $0x10] sm:$0xff]
        %v1080 = vld [vmem:[#allocation2 + $0x18] sm:$0xff]
        %v1081 = vld [vmem:[#allocation2 + $0x28] sm:$0xff]
        %v1082 = vld [vmem:[#allocation2 + $0x30] sm:$0xff]
        %v1083 = vld [vmem:[#allocation2 + $0x38] sm:$0xff]
        %v1084 = vld [vmem:[#allocation2 + $0x48] sm:$0xff]
        %v1085 = vld [vmem:[#allocation2 + $0x50] sm:$0xff]
        %v1086 = vld [vmem:[#allocation2 + $0x58] sm:$0xff]
        %v1087 = vld [vmem:[#allocation2 + $0x68] sm:$0xff]
        %v1088 = vld [vmem:[#allocation2 + $0x70] sm:$0xff]
        %v1089 = vld [vmem:[#allocation2 + $0x78] sm:$0xff]
        %v1090 = vsel %vm357, 1, 0
        %v1091 = vsel %vm358, 1, 0
        %vm1092 = vcmp.eq.s32.totalorder %v1090, 1
        %vm1093 = vcmp.eq.s32.totalorder %v1091, 1
        %1106 = vrot.lane.b32.xlu0 %v1078, 127
        %v1107 = vpop.permute.xlu0 %1106
        %1108 = vrot.lane.b32.xlu0 %v1079, 127
        %v1109 = vpop.permute.xlu0 %1108
        %1110 = vrot.lane.b32.xlu0 %v1080, 127
        %v1111 = vpop.permute.xlu0 %1110
        %1112 = vrot.lane.b32.xlu0 %v1081, 127
        %v1113 = vpop.permute.xlu0 %1112
        %1114 = vrot.lane.b32.xlu0 %v1082, 127
        %v1115 = vpop.permute.xlu0 %1114
        %1116 = vrot.lane.b32.xlu0 %v1083, 127
        %v1117 = vpop.permute.xlu0 %1116
        %1118 = vrot.lane.b32.xlu0 %v1084, 127
        %v1119 = vpop.permute.xlu0 %1118
        %1120 = vrot.lane.b32.xlu0 %v1085, 127
        %v1121 = vpop.permute.xlu0 %1120
        %1122 = vrot.lane.b32.xlu0 %v1086, 127
        %v1123 = vpop.permute.xlu0 %1122
        %1124 = vrot.lane.b32.xlu0 %v1087, 127
        %v1125 = vpop.permute.xlu0 %1124
        %1126 = vrot.lane.b32.xlu0 %v1088, 127
        %v1127 = vpop.permute.xlu0 %1126
        %1128 = vrot.lane.b32.xlu0 %v1089, 127
        %v1129 = vpop.permute.xlu0 %1128
        %vm1130 = vcmask 1039360
        %v1131 = vsel %vm1130, %v1107, %v1109
        %v1132 = vsel %vm1130, %v1109, %v1111
        %v1133 = vsel %vm1130, %v1113, %v1115
        %v1134 = vsel %vm1130, %v1115, %v1117
        %v1135 = vsel %vm1130, %v1119, %v1121
        %v1136 = vsel %vm1130, %v1121, %v1123
        %v1137 = vsel %vm1130, %v1125, %v1127
        %v1138 = vsel %vm1130, %v1127, %v1129
        %v1147 = vsel %vm1092, %v1131, 0.0
        %v1148 = vsel %vm1093, %v1132, 0.0
        %v1149 = vsel %vm1092, %v1133, 0.0
        %v1150 = vsel %vm1093, %v1134, 0.0
        %v1151 = vsel %vm1092, %v1135, 0.0
        %v1152 = vsel %vm1093, %v1136, 0.0
        %v1153 = vsel %vm1092, %v1137, 0.0
        %v1154 = vsel %vm1093, %v1138, 0.0
        %1155 = vst [vmem:[#allocation3 + $0x280] sm:$0xff] %v1147
        %1156 = vst [vmem:[#allocation3 + $0x288] sm:$0xff] %v1148
        %1157 = vst [vmem:[#allocation3 + $0x290] sm:$0xff] %v1149
        %1158 = vst [vmem:[#allocation3 + $0x298] sm:$0xff] %v1150
        %1159 = vst [vmem:[#allocation3 + $0x2a0] sm:$0xff] %v1151
        %1160 = vst [vmem:[#allocation3 + $0x2a8] sm:$0xff] %v1152
        %1161 = vst [vmem:[#allocation3 + $0x2b0] sm:$0xff] %v1153
        %1162 = vst [vmem:[#allocation3 + $0x2b8] sm:$0xff] %v1154
        %v1163 = vld [vmem:[#allocation2 + $0x8] sm:$0xff]
        %v1164 = vld [vmem:[#allocation2 + $0x10] sm:$0xff]
        %v1165 = vld [vmem:[#allocation2 + $0x18] sm:$0xff]
        %v1166 = vld [vmem:[#allocation2 + $0x28] sm:$0xff]
        %v1167 = vld [vmem:[#allocation2 + $0x30] sm:$0xff]
        %v1168 = vld [vmem:[#allocation2 + $0x38] sm:$0xff]
        %v1169 = vld [vmem:[#allocation2 + $0x48] sm:$0xff]
        %v1170 = vld [vmem:[#allocation2 + $0x50] sm:$0xff]
        %v1171 = vld [vmem:[#allocation2 + $0x58] sm:$0xff]
        %v1172 = vld [vmem:[#allocation2 + $0x68] sm:$0xff]
        %v1173 = vld [vmem:[#allocation2 + $0x70] sm:$0xff]
        %v1174 = vld [vmem:[#allocation2 + $0x78] sm:$0xff]
        %1187 = vrot.lane.b32.xlu0 %v1163, 96
        %v1188 = vpop.permute.xlu0 %1187
        %1189 = vrot.lane.b32.xlu0 %v1164, 96
        %v1190 = vpop.permute.xlu0 %1189
        %1191 = vrot.lane.b32.xlu0 %v1165, 96
        %v1192 = vpop.permute.xlu0 %1191
        %1193 = vrot.lane.b32.xlu0 %v1166, 96
        %v1194 = vpop.permute.xlu0 %1193
        %1195 = vrot.lane.b32.xlu0 %v1167, 96
        %v1196 = vpop.permute.xlu0 %1195
        %1197 = vrot.lane.b32.xlu0 %v1168, 96
        %v1198 = vpop.permute.xlu0 %1197
        %1199 = vrot.lane.b32.xlu0 %v1169, 96
        %v1200 = vpop.permute.xlu0 %1199
        %1201 = vrot.lane.b32.xlu0 %v1170, 96
        %v1202 = vpop.permute.xlu0 %1201
        %1203 = vrot.lane.b32.xlu0 %v1171, 96
        %v1204 = vpop.permute.xlu0 %1203
        %1205 = vrot.lane.b32.xlu0 %v1172, 96
        %v1206 = vpop.permute.xlu0 %1205
        %1207 = vrot.lane.b32.xlu0 %v1173, 96
        %v1208 = vpop.permute.xlu0 %1207
        %1209 = vrot.lane.b32.xlu0 %v1174, 96
        %v1210 = vpop.permute.xlu0 %1209
        %vm1211 = vcmask 785408
        %v1212 = vsel %vm1211, %v1188, %v1190
        %v1213 = vsel %vm1211, %v1190, %v1192
        %v1214 = vsel %vm1211, %v1194, %v1196
        %v1215 = vsel %vm1211, %v1196, %v1198
        %v1216 = vsel %vm1211, %v1200, %v1202
        %v1217 = vsel %vm1211, %v1202, %v1204
        %v1218 = vsel %vm1211, %v1206, %v1208
        %v1219 = vsel %vm1211, %v1208, %v1210
        %1228 = vst [vmem:[#allocation3 + $0x140] sm:$0xff] %v1212
        %1229 = vst [vmem:[#allocation3 + $0x148] sm:$0xff] %v1213
        %1230 = vst [vmem:[#allocation3 + $0x150] sm:$0xff] %v1214
        %1231 = vst [vmem:[#allocation3 + $0x158] sm:$0xff] %v1215
        %1232 = vst [vmem:[#allocation3 + $0x160] sm:$0xff] %v1216
        %1233 = vst [vmem:[#allocation3 + $0x168] sm:$0xff] %v1217
        %1234 = vst [vmem:[#allocation3 + $0x170] sm:$0xff] %v1218
        %1235 = vst [vmem:[#allocation3 + $0x178] sm:$0xff] %v1219
        %v1236 = vld [vmem:[#allocation2 + $0x8] sm:$0xff]
        %v1237 = vld [vmem:[#allocation2 + $0x10] sm:$0xff]
        %v1238 = vld [vmem:[#allocation2 + $0x18] sm:$0xff]
        %v1239 = vld [vmem:[#allocation2 + $0x28] sm:$0xff]
        %v1240 = vld [vmem:[#allocation2 + $0x30] sm:$0xff]
        %v1241 = vld [vmem:[#allocation2 + $0x38] sm:$0xff]
        %v1242 = vld [vmem:[#allocation2 + $0x48] sm:$0xff]
        %v1243 = vld [vmem:[#allocation2 + $0x50] sm:$0xff]
        %v1244 = vld [vmem:[#allocation2 + $0x58] sm:$0xff]
        %v1245 = vld [vmem:[#allocation2 + $0x68] sm:$0xff]
        %v1246 = vld [vmem:[#allocation2 + $0x70] sm:$0xff]
        %v1247 = vld [vmem:[#allocation2 + $0x78] sm:$0xff]
        %v1248 = vsel %vm365, 1, 0
        %v1249 = vsel %vm366, 1, 0
        %vm1250 = vcmp.eq.s32.totalorder %v1248, 1
        %vm1251 = vcmp.eq.s32.totalorder %v1249, 1
        %1264 = vrot.lane.b32.xlu0 %v1236, 126
        %v1265 = vpop.permute.xlu0 %1264
        %1266 = vrot.lane.b32.xlu0 %v1237, 126
        %v1267 = vpop.permute.xlu0 %1266
        %1268 = vrot.lane.b32.xlu0 %v1238, 126
        %v1269 = vpop.permute.xlu0 %1268
        %1270 = vrot.lane.b32.xlu0 %v1239, 126
        %v1271 = vpop.permute.xlu0 %1270
        %1272 = vrot.lane.b32.xlu0 %v1240, 126
        %v1273 = vpop.permute.xlu0 %1272
        %1274 = vrot.lane.b32.xlu0 %v1241, 126
        %v1275 = vpop.permute.xlu0 %1274
        %1276 = vrot.lane.b32.xlu0 %v1242, 126
        %v1277 = vpop.permute.xlu0 %1276
        %1278 = vrot.lane.b32.xlu0 %v1243, 126
        %v1279 = vpop.permute.xlu0 %1278
        %1280 = vrot.lane.b32.xlu0 %v1244, 126
        %v1281 = vpop.permute.xlu0 %1280
        %1282 = vrot.lane.b32.xlu0 %v1245, 126
        %v1283 = vpop.permute.xlu0 %1282
        %1284 = vrot.lane.b32.xlu0 %v1246, 126
        %v1285 = vpop.permute.xlu0 %1284
        %1286 = vrot.lane.b32.xlu0 %v1247, 126
        %v1287 = vpop.permute.xlu0 %1286
        %vm1288 = vcmask 1031168
        %v1289 = vsel %vm1288, %v1265, %v1267
        %v1290 = vsel %vm1288, %v1267, %v1269
        %v1291 = vsel %vm1288, %v1271, %v1273
        %v1292 = vsel %vm1288, %v1273, %v1275
        %v1293 = vsel %vm1288, %v1277, %v1279
        %v1294 = vsel %vm1288, %v1279, %v1281
        %v1295 = vsel %vm1288, %v1283, %v1285
        %v1296 = vsel %vm1288, %v1285, %v1287
        %v1305 = vsel %vm1250, %v1289, 0.0
        %v1306 = vsel %vm1251, %v1290, 0.0
        %v1307 = vsel %vm1250, %v1291, 0.0
        %v1308 = vsel %vm1251, %v1292, 0.0
        %v1309 = vsel %vm1250, %v1293, 0.0
        %v1310 = vsel %vm1251, %v1294, 0.0
        %v1311 = vsel %vm1250, %v1295, 0.0
        %v1312 = vsel %vm1251, %v1296, 0.0
        %1313 = vst [vmem:[#allocation3 + $0x2c0] sm:$0xff] %v1305
        %1314 = vst [vmem:[#allocation3 + $0x2c8] sm:$0xff] %v1306
        %1315 = vst [vmem:[#allocation3 + $0x2d0] sm:$0xff] %v1307
        %1316 = vst [vmem:[#allocation3 + $0x2d8] sm:$0xff] %v1308
        %1317 = vst [vmem:[#allocation3 + $0x2e0] sm:$0xff] %v1309
        %1318 = vst [vmem:[#allocation3 + $0x2e8] sm:$0xff] %v1310
        %1319 = vst [vmem:[#allocation3 + $0x2f0] sm:$0xff] %v1311
        %1320 = vst [vmem:[#allocation3 + $0x2f8] sm:$0xff] %v1312
        %v1321 = vld [vmem:[#allocation2 + $0x8] sm:$0xff]
        %v1322 = vld [vmem:[#allocation2 + $0x10] sm:$0xff]
        %v1323 = vld [vmem:[#allocation2 + $0x18] sm:$0xff]
        %v1324 = vld [vmem:[#allocation2 + $0x28] sm:$0xff]
        %v1325 = vld [vmem:[#allocation2 + $0x30] sm:$0xff]
        %v1326 = vld [vmem:[#allocation2 + $0x38] sm:$0xff]
        %v1327 = vld [vmem:[#allocation2 + $0x48] sm:$0xff]
        %v1328 = vld [vmem:[#allocation2 + $0x50] sm:$0xff]
        %v1329 = vld [vmem:[#allocation2 + $0x58] sm:$0xff]
        %v1330 = vld [vmem:[#allocation2 + $0x68] sm:$0xff]
        %v1331 = vld [vmem:[#allocation2 + $0x70] sm:$0xff]
        %v1332 = vld [vmem:[#allocation2 + $0x78] sm:$0xff]
        %1345 = vrot.lane.b32.xlu0 %v1321, 80
        %v1346 = vpop.permute.xlu0 %1345
        %1347 = vrot.lane.b32.xlu0 %v1322, 80
        %v1348 = vpop.permute.xlu0 %1347
        %1349 = vrot.lane.b32.xlu0 %v1323, 80
        %v1350 = vpop.permute.xlu0 %1349
        %1351 = vrot.lane.b32.xlu0 %v1324, 80
        %v1352 = vpop.permute.xlu0 %1351
        %1353 = vrot.lane.b32.xlu0 %v1325, 80
        %v1354 = vpop.permute.xlu0 %1353
        %1355 = vrot.lane.b32.xlu0 %v1326, 80
        %v1356 = vpop.permute.xlu0 %1355
        %1357 = vrot.lane.b32.xlu0 %v1327, 80
        %v1358 = vpop.permute.xlu0 %1357
        %1359 = vrot.lane.b32.xlu0 %v1328, 80
        %v1360 = vpop.permute.xlu0 %1359
        %1361 = vrot.lane.b32.xlu0 %v1329, 80
        %v1362 = vpop.permute.xlu0 %1361
        %1363 = vrot.lane.b32.xlu0 %v1330, 80
        %v1364 = vpop.permute.xlu0 %1363
        %1365 = vrot.lane.b32.xlu0 %v1331, 80
        %v1366 = vpop.permute.xlu0 %1365
        %1367 = vrot.lane.b32.xlu0 %v1332, 80
        %v1368 = vpop.permute.xlu0 %1367
        %vm1369 = vcmask 654336
        %v1370 = vsel %vm1369, %v1346, %v1348
        %v1371 = vsel %vm1369, %v1348, %v1350
        %v1372 = vsel %vm1369, %v1352, %v1354
        %v1373 = vsel %vm1369, %v1354, %v1356
        %v1374 = vsel %vm1369, %v1358, %v1360
        %v1375 = vsel %vm1369, %v1360, %v1362
        %v1376 = vsel %vm1369, %v1364, %v1366
        %v1377 = vsel %vm1369, %v1366, %v1368
        %1386 = vst [vmem:[#allocation3 + $0x180] sm:$0xff] %v1370
        %1387 = vst [vmem:[#allocation3 + $0x188] sm:$0xff] %v1371
        %1388 = vst [vmem:[#allocation3 + $0x190] sm:$0xff] %v1372
        %1389 = vst [vmem:[#allocation3 + $0x198] sm:$0xff] %v1373
        %1390 = vst [vmem:[#allocation3 + $0x1a0] sm:$0xff] %v1374
        %1391 = vst [vmem:[#allocation3 + $0x1a8] sm:$0xff] %v1375
        %1392 = vst [vmem:[#allocation3 + $0x1b0] sm:$0xff] %v1376
        %1393 = vst [vmem:[#allocation3 + $0x1b8] sm:$0xff] %v1377
        %v1394 = vld [vmem:[#allocation2 + $0x8] sm:$0xff]
        %v1395 = vld [vmem:[#allocation2 + $0x10] sm:$0xff]
        %v1396 = vld [vmem:[#allocation2 + $0x18] sm:$0xff]
        %v1397 = vld [vmem:[#allocation2 + $0x28] sm:$0xff]
        %v1398 = vld [vmem:[#allocation2 + $0x30] sm:$0xff]
        %v1399 = vld [vmem:[#allocation2 + $0x38] sm:$0xff]
        %v1400 = vld [vmem:[#allocation2 + $0x48] sm:$0xff]
        %v1401 = vld [vmem:[#allocation2 + $0x50] sm:$0xff]
        %v1402 = vld [vmem:[#allocation2 + $0x58] sm:$0xff]
        %v1403 = vld [vmem:[#allocation2 + $0x68] sm:$0xff]
        %v1404 = vld [vmem:[#allocation2 + $0x70] sm:$0xff]
        %v1405 = vld [vmem:[#allocation2 + $0x78] sm:$0xff]
        %v1406 = vsel %vm373, 1, 0
        %v1407 = vsel %vm374, 1, 0
        %vm1408 = vcmp.eq.s32.totalorder %v1406, 1
        %vm1409 = vcmp.eq.s32.totalorder %v1407, 1
        %1422 = vrot.lane.b32.xlu0 %v1394, 125
        %v1423 = vpop.permute.xlu0 %1422
        %1424 = vrot.lane.b32.xlu0 %v1395, 125
        %v1425 = vpop.permute.xlu0 %1424
        %1426 = vrot.lane.b32.xlu0 %v1396, 125
        %v1427 = vpop.permute.xlu0 %1426
        %1428 = vrot.lane.b32.xlu0 %v1397, 125
        %v1429 = vpop.permute.xlu0 %1428
        %1430 = vrot.lane.b32.xlu0 %v1398, 125
        %v1431 = vpop.permute.xlu0 %1430
        %1432 = vrot.lane.b32.xlu0 %v1399, 125
        %v1433 = vpop.permute.xlu0 %1432
        %1434 = vrot.lane.b32.xlu0 %v1400, 125
        %v1435 = vpop.permute.xlu0 %1434
        %1436 = vrot.lane.b32.xlu0 %v1401, 125
        %v1437 = vpop.permute.xlu0 %1436
        %1438 = vrot.lane.b32.xlu0 %v1402, 125
        %v1439 = vpop.permute.xlu0 %1438
        %1440 = vrot.lane.b32.xlu0 %v1403, 125
        %v1441 = vpop.permute.xlu0 %1440
        %1442 = vrot.lane.b32.xlu0 %v1404, 125
        %v1443 = vpop.permute.xlu0 %1442
        %1444 = vrot.lane.b32.xlu0 %v1405, 125
        %v1445 = vpop.permute.xlu0 %1444
        %vm1446 = vcmask 1022976
        %v1447 = vsel %vm1446, %v1423, %v1425
        %v1448 = vsel %vm1446, %v1425, %v1427
        %v1449 = vsel %vm1446, %v1429, %v1431
        %v1450 = vsel %vm1446, %v1431, %v1433
        %v1451 = vsel %vm1446, %v1435, %v1437
        %v1452 = vsel %vm1446, %v1437, %v1439
        %v1453 = vsel %vm1446, %v1441, %v1443
        %v1454 = vsel %vm1446, %v1443, %v1445
        %v1463 = vsel %vm1408, %v1447, 0.0
        %v1464 = vsel %vm1409, %v1448, 0.0
        %v1465 = vsel %vm1408, %v1449, 0.0
        %v1466 = vsel %vm1409, %v1450, 0.0
        %v1467 = vsel %vm1408, %v1451, 0.0
        %v1468 = vsel %vm1409, %v1452, 0.0
        %v1469 = vsel %vm1408, %v1453, 0.0
        %v1470 = vsel %vm1409, %v1454, 0.0
        %1471 = vst [vmem:[#allocation3 + $0x300] sm:$0xff] %v1463
        %1472 = vst [vmem:[#allocation3 + $0x308] sm:$0xff] %v1464
        %1473 = vst [vmem:[#allocation3 + $0x310] sm:$0xff] %v1465
        %1474 = vst [vmem:[#allocation3 + $0x318] sm:$0xff] %v1466
        %1475 = vst [vmem:[#allocation3 + $0x320] sm:$0xff] %v1467
        %1476 = vst [vmem:[#allocation3 + $0x328] sm:$0xff] %v1468
        %1477 = vst [vmem:[#allocation3 + $0x330] sm:$0xff] %v1469
        %1478 = vst [vmem:[#allocation3 + $0x338] sm:$0xff] %v1470
        %v1479 = vld [vmem:[#allocation4] sm:$0xff]
        %v1480 = vld [vmem:[#allocation4 + $0x8] sm:$0xff]
        %v1481 = vld [vmem:[#allocation4 + $0x10] sm:$0xff]
        %v1482 = vld [vmem:[#allocation4 + $0x18] sm:$0xff]
        %v1483 = vld [vmem:[#allocation4 + $0x20] sm:$0xff]
        %v1484 = vld [vmem:[#allocation4 + $0x28] sm:$0xff]
        %v1485 = vld [vmem:[#allocation4 + $0x30] sm:$0xff]
        %v1486 = vld [vmem:[#allocation4 + $0x38] sm:$0xff]
        %v1487 = vld [vmem:[#allocation4 + $0x40] sm:$0xff]
        %v1488 = vld [vmem:[#allocation4 + $0x48] sm:$0xff]
        %v1489 = vld [vmem:[#allocation4 + $0x50] sm:$0xff]
        %v1490 = vld [vmem:[#allocation4 + $0x58] sm:$0xff]
        %v1491 = vld [vmem:[#allocation4 + $0x60] sm:$0xff]
        %v1492 = vld [vmem:[#allocation4 + $0x68] sm:$0xff]
        %v1493 = vld [vmem:[#allocation4 + $0x70] sm:$0xff]
        %v1494 = vld [vmem:[#allocation4 + $0x78] sm:$0xff]
        %v1495 = vld [vmem:[#allocation3] sm:$0xff]
        %v1496 = vld [vmem:[#allocation3 + $0x8] sm:$0xff]
        %v1497 = vld [vmem:[#allocation3 + $0x10] sm:$0xff]
        %v1498 = vld [vmem:[#allocation3 + $0x18] sm:$0xff]
        %v1499 = vld [vmem:[#allocation3 + $0x20] sm:$0xff]
        %v1500 = vld [vmem:[#allocation3 + $0x28] sm:$0xff]
        %v1501 = vld [vmem:[#allocation3 + $0x30] sm:$0xff]
        %v1502 = vld [vmem:[#allocation3 + $0x38] sm:$0xff]
        %v1503 = vld [vmem:[#allocation3 + $0x40] sm:$0xff]
        %v1504 = vld [vmem:[#allocation3 + $0x48] sm:$0xff]
        %v1505 = vld [vmem:[#allocation3 + $0x50] sm:$0xff]
        %v1506 = vld [vmem:[#allocation3 + $0x58] sm:$0xff]
        %v1507 = vld [vmem:[#allocation3 + $0x60] sm:$0xff]
        %v1508 = vld [vmem:[#allocation3 + $0x68] sm:$0xff]
        %v1509 = vld [vmem:[#allocation3 + $0x70] sm:$0xff]
        %v1510 = vld [vmem:[#allocation3 + $0x78] sm:$0xff]
        %v1511 = vld [vmem:[#allocation3 + $0x80] sm:$0xff]
        %v1512 = vld [vmem:[#allocation3 + $0x88] sm:$0xff]
        %v1513 = vld [vmem:[#allocation3 + $0x90] sm:$0xff]
        %v1514 = vld [vmem:[#allocation3 + $0x98] sm:$0xff]
        %v1515 = vld [vmem:[#allocation3 + $0xa0] sm:$0xff]
        %v1516 = vld [vmem:[#allocation3 + $0xa8] sm:$0xff]
        %v1517 = vld [vmem:[#allocation3 + $0xb0] sm:$0xff]
        %v1518 = vld [vmem:[#allocation3 + $0xb8] sm:$0xff]
        %v1519 = vld [vmem:[#allocation3 + $0xc0] sm:$0xff]
        %v1520 = vld [vmem:[#allocation3 + $0xc8] sm:$0xff]
        %v1521 = vld [vmem:[#allocation3 + $0xd0] sm:$0xff]
        %v1522 = vld [vmem:[#allocation3 + $0xd8] sm:$0xff]
        %v1523 = vld [vmem:[#allocation3 + $0xe0] sm:$0xff]
        %v1524 = vld [vmem:[#allocation3 + $0xe8] sm:$0xff]
        %v1525 = vld [vmem:[#allocation3 + $0xf0] sm:$0xff]
        %v1526 = vld [vmem:[#allocation3 + $0xf8] sm:$0xff]
        %v1527 = vld [vmem:[#allocation3 + $0x100] sm:$0xff]
        %v1528 = vld [vmem:[#allocation3 + $0x108] sm:$0xff]
        %v1529 = vld [vmem:[#allocation3 + $0x110] sm:$0xff]
        %v1530 = vld [vmem:[#allocation3 + $0x118] sm:$0xff]
        %v1531 = vld [vmem:[#allocation3 + $0x120] sm:$0xff]
        %v1532 = vld [vmem:[#allocation3 + $0x128] sm:$0xff]
        %v1533 = vld [vmem:[#allocation3 + $0x130] sm:$0xff]
        %v1534 = vld [vmem:[#allocation3 + $0x138] sm:$0xff]
        %v1535 = vld [vmem:[#allocation3 + $0x140] sm:$0xff]
        %v1536 = vld [vmem:[#allocation3 + $0x148] sm:$0xff]
        %v1537 = vld [vmem:[#allocation3 + $0x150] sm:$0xff]
        %v1538 = vld [vmem:[#allocation3 + $0x158] sm:$0xff]
        %v1539 = vld [vmem:[#allocation3 + $0x160] sm:$0xff]
        %v1540 = vld [vmem:[#allocation3 + $0x168] sm:$0xff]
        %v1541 = vld [vmem:[#allocation3 + $0x170] sm:$0xff]
        %v1542 = vld [vmem:[#allocation3 + $0x178] sm:$0xff]
        %v1543 = vld [vmem:[#allocation3 + $0x180] sm:$0xff]
        %v1544 = vld [vmem:[#allocation3 + $0x188] sm:$0xff]
        %v1545 = vld [vmem:[#allocation3 + $0x190] sm:$0xff]
        %v1546 = vld [vmem:[#allocation3 + $0x198] sm:$0xff]
        %v1547 = vld [vmem:[#allocation3 + $0x1a0] sm:$0xff]
        %v1548 = vld [vmem:[#allocation3 + $0x1a8] sm:$0xff]
        %v1549 = vld [vmem:[#allocation3 + $0x1b0] sm:$0xff]
        %v1550 = vld [vmem:[#allocation3 + $0x1b8] sm:$0xff]
        %v1551 = vld [vmem:[#allocation3 + $0x1c0] sm:$0xff]
        %v1552 = vld [vmem:[#allocation3 + $0x1c8] sm:$0xff]
        %v1553 = vld [vmem:[#allocation3 + $0x1d0] sm:$0xff]
        %v1554 = vld [vmem:[#allocation3 + $0x1d8] sm:$0xff]
        %v1555 = vld [vmem:[#allocation3 + $0x1e0] sm:$0xff]
        %v1556 = vld [vmem:[#allocation3 + $0x1e8] sm:$0xff]
        %v1557 = vld [vmem:[#allocation3 + $0x1f0] sm:$0xff]
        %v1558 = vld [vmem:[#allocation3 + $0x1f8] sm:$0xff]
        %v1559 = vld [vmem:[#allocation3 + $0x200] sm:$0xff]
        %v1560 = vld [vmem:[#allocation3 + $0x208] sm:$0xff]
        %v1561 = vld [vmem:[#allocation3 + $0x210] sm:$0xff]
        %v1562 = vld [vmem:[#allocation3 + $0x218] sm:$0xff]
        %v1563 = vld [vmem:[#allocation3 + $0x220] sm:$0xff]
        %v1564 = vld [vmem:[#allocation3 + $0x228] sm:$0xff]
        %v1565 = vld [vmem:[#allocation3 + $0x230] sm:$0xff]
        %v1566 = vld [vmem:[#allocation3 + $0x238] sm:$0xff]
        %v1567 = vld [vmem:[#allocation3 + $0x240] sm:$0xff]
        %v1568 = vld [vmem:[#allocation3 + $0x248] sm:$0xff]
        %v1569 = vld [vmem:[#allocation3 + $0x250] sm:$0xff]
        %v1570 = vld [vmem:[#allocation3 + $0x258] sm:$0xff]
        %v1571 = vld [vmem:[#allocation3 + $0x260] sm:$0xff]
        %v1572 = vld [vmem:[#allocation3 + $0x268] sm:$0xff]
        %v1573 = vld [vmem:[#allocation3 + $0x270] sm:$0xff]
        %v1574 = vld [vmem:[#allocation3 + $0x278] sm:$0xff]
        %v1575 = vld [vmem:[#allocation3 + $0x280] sm:$0xff]
        %v1576 = vld [vmem:[#allocation3 + $0x288] sm:$0xff]
        %v1577 = vld [vmem:[#allocation3 + $0x290] sm:$0xff]
        %v1578 = vld [vmem:[#allocation3 + $0x298] sm:$0xff]
        %v1579 = vld [vmem:[#allocation3 + $0x2a0] sm:$0xff]
        %v1580 = vld [vmem:[#allocation3 + $0x2a8] sm:$0xff]
        %v1581 = vld [vmem:[#allocation3 + $0x2b0] sm:$0xff]
        %v1582 = vld [vmem:[#allocation3 + $0x2b8] sm:$0xff]
        %v1583 = vld [vmem:[#allocation3 + $0x2c0] sm:$0xff]
        %v1584 = vld [vmem:[#allocation3 + $0x2c8] sm:$0xff]
        %v1585 = vld [vmem:[#allocation3 + $0x2d0] sm:$0xff]
        %v1586 = vld [vmem:[#allocation3 + $0x2d8] sm:$0xff]
        %v1587 = vld [vmem:[#allocation3 + $0x2e0] sm:$0xff]
        %v1588 = vld [vmem:[#allocation3 + $0x2e8] sm:$0xff]
        %v1589 = vld [vmem:[#allocation3 + $0x2f0] sm:$0xff]
        %v1590 = vld [vmem:[#allocation3 + $0x2f8] sm:$0xff]
        %v1591 = vld [vmem:[#allocation3 + $0x300] sm:$0xff]
        %v1592 = vld [vmem:[#allocation3 + $0x308] sm:$0xff]
        %v1593 = vld [vmem:[#allocation3 + $0x310] sm:$0xff]
        %v1594 = vld [vmem:[#allocation3 + $0x318] sm:$0xff]
        %v1595 = vld [vmem:[#allocation3 + $0x320] sm:$0xff]
        %v1596 = vld [vmem:[#allocation3 + $0x328] sm:$0xff]
        %v1597 = vld [vmem:[#allocation3 + $0x330] sm:$0xff]
        %v1598 = vld [vmem:[#allocation3 + $0x338] sm:$0xff]
        %v1599 = vld [vmem:[%s4] sm:$0xff]
        %v1600 = vld [vmem:[%s4 + $0x8] sm:$0xff]
        %v1601 = vld [vmem:[%s4 + $0x10] sm:$0xff]
        %v1602 = vld [vmem:[%s4 + $0x18] sm:$0xff]
        %1604 = vset.pattern.permute.xlu0 0
        %1605 = vperm.xlu0 %1604, %v1599
        %v1606 = vpop.permute.xlu0 %1605
        %1609 = vset.pattern.permute.xlu0 0
        %1610 = vperm.xlu0 %1609, %v1600
        %v1611 = vpop.permute.xlu0 %1610
        %1614 = vset.pattern.permute.xlu0 0
        %1615 = vperm.xlu0 %1614, %v1601
        %v1616 = vpop.permute.xlu0 %1615
        %1619 = vset.pattern.permute.xlu0 0
        %1620 = vperm.xlu0 %1619, %v1602
        %v1621 = vpop.permute.xlu0 %1620
        %v1624 = vsel %vm737, %v1482, 0
        %v1627 = vsel %vm737, %v1486, 0
        %v1630 = vsel %vm737, %v1490, 0
        %v1633 = vsel %vm737, %v1494, 0
        %1635 = vmatprep.subr.mxu0 %v1496
        %1636 = vmatpush1.msra.mxu0 %v1495
        %1637 = vmatprep.subr.mxu0 %v1498
        %1638 = vmatpush1.msra.mxu0 %v1497
        %1639 = vmatprep.subr.mxu0 %v1500
        %1640 = vmatpush1.msra.mxu0 %v1499
        %1641 = vmatprep.subr.mxu0 %v1502
        %1642 = vmatpush1.msra.mxu0 %v1501
        %1643 = vmatprep.subr.mxu0 %v1504
        %1644 = vmatpush1.msra.mxu0 %v1503
        %1645 = vmatprep.subr.mxu0 %v1506
        %1646 = vmatpush1.msra.mxu0 %v1505
        %1647 = vmatprep.subr.mxu0 %v1508
        %1648 = vmatpush1.msra.mxu0 %v1507
        %1649 = vmatprep.subr.mxu0 %v1510
        %1650 = vmatpush1.msra.mxu0 %v1509
        %1651 = vmatprep.subr.mxu0 %v1512
        %1652 = vmatpush1.msra.mxu0 %v1511
        %1653 = vmatprep.subr.mxu0 %v1514
        %1654 = vmatpush1.msra.mxu0 %v1513
        %1655 = vmatprep.subr.mxu0 %v1516
        %1656 = vmatpush1.msra.mxu0 %v1515
        %1657 = vmatprep.subr.mxu0 %v1518
        %1658 = vmatpush1.msra.mxu0 %v1517
        %1659 = vmatprep.subr.mxu0 %v1520
        %1660 = vmatpush1.msra.mxu0 %v1519
        %1661 = vmatprep.subr.mxu0 %v1522
        %1662 = vmatpush1.msra.mxu0 %v1521
        %1663 = vmatprep.subr.mxu0 %v1524
        %1664 = vmatpush1.msra.mxu0 %v1523
        %1665 = vmatprep.subr.mxu0 %v1526
        %1666 = vmatpush1.msra.mxu0 %v1525
        %1667 = vmatprep.subr.mxu0 %v1528
        %1668 = vmatpush1.msra.mxu0 %v1527
        %1669 = vmatprep.subr.mxu0 %v1530
        %1670 = vmatpush1.msra.mxu0 %v1529
        %1671 = vmatprep.subr.mxu0 %v1532
        %1672 = vmatpush1.msra.mxu0 %v1531
        %1673 = vmatprep.subr.mxu0 %v1534
        %1674 = vmatpush1.msra.mxu0 %v1533
        %1675 = vmatprep.subr.mxu0 %v1536
        %1676 = vmatpush1.msra.mxu0 %v1535
        %1677 = vmatprep.subr.mxu0 %v1538
        %1678 = vmatpush1.msra.mxu0 %v1537
        %1679 = vmatprep.subr.mxu0 %v1540
        %1680 = vmatpush1.msra.mxu0 %v1539
        %1681 = vmatprep.subr.mxu0 %v1542
        %1682 = vmatpush1.msra.mxu0 %v1541
        %1683 = vmatprep.subr.mxu0 %v1544
        %1684 = vmatpush1.msra.mxu0 %v1543
        %1685 = vmatprep.subr.mxu0 %v1546
        %1686 = vmatpush1.msra.mxu0 %v1545
        %1687 = vmatprep.subr.mxu0 %v1548
        %1688 = vmatpush1.msra.mxu0 %v1547
        %1689 = vmatprep.subr.mxu0 %v1550
        %1690 = vmatpush1.msra.mxu0 %v1549
        %1691 = vmatprep.subr.mxu0 %v1552
        %1692 = vmatpush1.msra.mxu0 %v1551
        %1693 = vmatprep.subr.mxu0 %v1554
        %1694 = vmatpush1.msra.mxu0 %v1553
        %1695 = vmatprep.subr.mxu0 %v1556
        %1696 = vmatpush1.msra.mxu0 %v1555
        %1697 = vmatprep.subr.mxu0 %v1558
        %1698 = vmatpush1.msra.mxu0 %v1557
        %1699 = vmatprep.mubr.f32.mxu0 %v1480
        %1700 = vmatmul.mubr.f32.gmra.mrb[0].mxu0 %v1479
        %v1701 = vpop.f32.mrb[0].mxu0
        %v1702 = vadd.f32 %v1606, %v1701
        %v1703 = vpop.f32.mrb[0].mxu0
        %v1704 = vadd.f32 %v1606, %v1703
        %1705 = vmatprep.mubr.f32.mxu0 %v1484
        %1706 = vmatmul.mubr.f32.gmra.mrb[0].mxu0 %v1483
        %v1707 = vpop.f32.mrb[0].mxu0
        %v1708 = vadd.f32 %v1611, %v1707
        %v1709 = vpop.f32.mrb[0].mxu0
        %v1710 = vadd.f32 %v1611, %v1709
        %1711 = vmatprep.mubr.f32.mxu0 %v1488
        %1712 = vmatmul.mubr.f32.gmra.mrb[0].mxu0 %v1487
        %v1713 = vpop.f32.mrb[0].mxu0
        %v1714 = vadd.f32 %v1616, %v1713
        %v1715 = vpop.f32.mrb[0].mxu0
        %v1716 = vadd.f32 %v1616, %v1715
        %1717 = vmatprep.mubr.f32.mxu0 %v1492
        %1718 = vmatmul.mubr.f32.gmra.mrb[0].mxu0 %v1491
        %v1719 = vpop.f32.mrb[0].mxu0
        %v1720 = vadd.f32 %v1621, %v1719
        %v1721 = vpop.f32.mrb[0].mxu0
        %v1722 = vadd.f32 %v1621, %v1721
        %1723 = vdwg.mxu0
        %1724 = vmatprep.subr.mxu0 %v1560
        %1725 = vmatpush1.msra.mxu0 %v1559
        %1726 = vmatprep.subr.mxu0 %v1562
        %1727 = vmatpush1.msra.mxu0 %v1561
        %1728 = vmatprep.subr.mxu0 %v1564
        %1729 = vmatpush1.msra.mxu0 %v1563
        %1730 = vmatprep.subr.mxu0 %v1566
        %1731 = vmatpush1.msra.mxu0 %v1565
        %1732 = vmatprep.subr.mxu0 %v1568
        %1733 = vmatpush1.msra.mxu0 %v1567
        %1734 = vmatprep.subr.mxu0 %v1570
        %1735 = vmatpush1.msra.mxu0 %v1569
        %1736 = vmatprep.subr.mxu0 %v1572
        %1737 = vmatpush1.msra.mxu0 %v1571
        %1738 = vmatprep.subr.mxu0 %v1574
        %1739 = vmatpush1.msra.mxu0 %v1573
        %1740 = vmatprep.subr.mxu0 %v1576
        %1741 = vmatpush1.msra.mxu0 %v1575
        %1742 = vmatprep.subr.mxu0 %v1578
        %1743 = vmatpush1.msra.mxu0 %v1577
        %1744 = vmatprep.subr.mxu0 %v1580
        %1745 = vmatpush1.msra.mxu0 %v1579
        %1746 = vmatprep.subr.mxu0 %v1582
        %1747 = vmatpush1.msra.mxu0 %v1581
        %1748 = vmatprep.subr.mxu0 %v1584
        %1749 = vmatpush1.msra.mxu0 %v1583
        %1750 = vmatprep.subr.mxu0 %v1586
        %1751 = vmatpush1.msra.mxu0 %v1585
        %1752 = vmatprep.subr.mxu0 %v1588
        %1753 = vmatpush1.msra.mxu0 %v1587
        %1754 = vmatprep.subr.mxu0 %v1590
        %1755 = vmatpush1.msra.mxu0 %v1589
        %1756 = vmatprep.subr.mxu0 %v1592
        %1757 = vmatpush1.msra.mxu0 %v1591
        %1758 = vmatprep.subr.mxu0 %v1594
        %1759 = vmatpush1.msra.mxu0 %v1593
        %1760 = vmatprep.subr.mxu0 %v1596
        %1761 = vmatpush1.msra.mxu0 %v1595
        %1762 = vmatprep.subr.mxu0 %v1598
        %1763 = vmatpush1.msra.mxu0 %v1597
        %1764 = vmatprep.subr.mxu0 0.0
        %1765 = vmatpush1.msra.mxu0 0.0
        %1766 = vmatprep.subr.mxu0 0.0
        %1767 = vmatpush1.msra.mxu0 0.0
        %1768 = vmatprep.subr.mxu0 0.0
        %1769 = vmatpush1.msra.mxu0 0.0
        %1770 = vmatprep.subr.mxu0 0.0
        %1771 = vmatpush1.msra.mxu0 0.0
        %1772 = vmatprep.subr.mxu0 0.0
        %1773 = vmatpush1.msra.mxu0 0.0
        %1774 = vmatprep.subr.mxu0 0.0
        %1775 = vmatpush1.msra.mxu0 0.0
        %1776 = vmatprep.subr.mxu0 0.0
        %1777 = vmatpush1.msra.mxu0 0.0
        %1778 = vmatprep.subr.mxu0 0.0
        %1779 = vmatpush1.msra.mxu0 0.0
        %1780 = vmatprep.subr.mxu0 0.0
        %1781 = vmatpush1.msra.mxu0 0.0
        %1782 = vmatprep.subr.mxu0 0.0
        %1783 = vmatpush1.msra.mxu0 0.0
        %1784 = vmatprep.subr.mxu0 0.0
        %1785 = vmatpush1.msra.mxu0 0.0
        %1786 = vmatprep.subr.mxu0 0.0
        %1787 = vmatpush1.msra.mxu0 0.0
        %1788 = vmatprep.mubr.f32.mxu0 %v1624
        %1789 = vmatmul.mubr.f32.gmra.mrb[0].mxu0 %v1481
        %v1790 = vpop.f32.mrb[0].mxu0
        %v1791 = vadd.f32 %v1702, %v1790
        %v1792 = vpop.f32.mrb[0].mxu0
        %v1793 = vadd.f32 %v1704, %v1792
        %1794 = vmatprep.mubr.f32.mxu0 %v1627
        %1795 = vmatmul.mubr.f32.gmra.mrb[0].mxu0 %v1485
        %v1796 = vpop.f32.mrb[0].mxu0
        %v1797 = vadd.f32 %v1708, %v1796
        %v1798 = vpop.f32.mrb[0].mxu0
        %v1799 = vadd.f32 %v1710, %v1798
        %1800 = vmatprep.mubr.f32.mxu0 %v1630
        %1801 = vmatmul.mubr.f32.gmra.mrb[0].mxu0 %v1489
        %v1802 = vpop.f32.mrb[0].mxu0
        %v1803 = vadd.f32 %v1714, %v1802
        %v1804 = vpop.f32.mrb[0].mxu0
        %v1805 = vadd.f32 %v1716, %v1804
        %1806 = vmatprep.mubr.f32.mxu0 %v1633
        %1807 = vmatmul.mubr.f32.gmra.mrb[0].mxu0 %v1493
        %v1808 = vpop.f32.mrb[0].mxu0
        %v1809 = vadd.f32 %v1720, %v1808
        %v1810 = vpop.f32.mrb[0].mxu0
        %v1811 = vadd.f32 %v1722, %v1810
        %1812 = vdwg.mxu0
        %v1813 = vmax.f32 %v1791, 0.0
        %v1814 = vmax.f32 %v1793, 0.0
        %v1815 = vmax.f32 %v1797, 0.0
        %v1816 = vmax.f32 %v1799, 0.0
        %v1817 = vmax.f32 %v1803, 0.0
        %v1818 = vmax.f32 %v1805, 0.0
        %v1819 = vmax.f32 %v1809, 0.0
        %v1820 = vmax.f32 %v1811, 0.0
        %v1821 = vld [vmem:[%s5] sm:$0xf]
        %v1822 = vld [vmem:[%s6] sm:$0xf]
        %1824 = vset.pattern.permute.xlu0 0
        %1825 = vperm.xlu0 %1824, %v1822
        %v1826 = vpop.permute.xlu0 %1825
        %v1829 = vsel %vm737, %v1821, 0
        %1831 = vmatprep.subr.mxu0 %v1814
        %1832 = vmatpush1.msra.mxu0 %v1813
        %1833 = vmatprep.subr.mxu0 %v1816
        %1834 = vmatpush1.msra.mxu0 %v1815
        %1835 = vmatprep.subr.mxu0 %v1818
        %1836 = vmatpush1.msra.mxu0 %v1817
        %1837 = vmatprep.subr.mxu0 %v1820
        %1838 = vmatpush1.msra.mxu0 %v1819
        %1839 = vmatprep.subr.mxu0 0.0
        %1840 = vmatpush1.msra.mxu0 0.0
        %1841 = vmatprep.subr.mxu0 0.0
        %1842 = vmatpush1.msra.mxu0 0.0
        %1843 = vmatprep.subr.mxu0 0.0
        %1844 = vmatpush1.msra.mxu0 0.0
        %1845 = vmatprep.subr.mxu0 0.0
        %1846 = vmatpush1.msra.mxu0 0.0
        %1847 = vmatprep.subr.mxu0 0.0
        %1848 = vmatpush1.msra.mxu0 0.0
        %1849 = vmatprep.subr.mxu0 0.0
        %1850 = vmatpush1.msra.mxu0 0.0
        %1851 = vmatprep.subr.mxu0 0.0
        %1852 = vmatpush1.msra.mxu0 0.0
        %1853 = vmatprep.subr.mxu0 0.0
        %1854 = vmatpush1.msra.mxu0 0.0
        %1855 = vmatprep.subr.mxu0 0.0
        %1856 = vmatpush1.msra.mxu0 0.0
        %1857 = vmatprep.subr.mxu0 0.0
        %1858 = vmatpush1.msra.mxu0 0.0
        %1859 = vmatprep.subr.mxu0 0.0
        %1860 = vmatpush1.msra.mxu0 0.0
        %1861 = vmatprep.subr.mxu0 0.0
        %1862 = vmatpush1.msra.mxu0 0.0
        %1863 = vmatprep.subr.mxu0 0.0
        %1864 = vmatpush1.msra.mxu0 0.0
        %1865 = vmatprep.subr.mxu0 0.0
        %1866 = vmatpush1.msra.mxu0 0.0
        %1867 = vmatprep.subr.mxu0 0.0
        %1868 = vmatpush1.msra.mxu0 0.0
        %1869 = vmatprep.subr.mxu0 0.0
        %1870 = vmatpush1.msra.mxu0 0.0
        %1871 = vmatprep.subr.mxu0 0.0
        %1872 = vmatpush1.msra.mxu0 0.0
        %1873 = vmatprep.subr.mxu0 0.0
        %1874 = vmatpush1.msra.mxu0 0.0
        %1875 = vmatprep.subr.mxu0 0.0
        %1876 = vmatpush1.msra.mxu0 0.0
        %1877 = vmatprep.subr.mxu0 0.0
        %1878 = vmatpush1.msra.mxu0 0.0
        %1879 = vmatprep.subr.mxu0 0.0
        %1880 = vmatpush1.msra.mxu0 0.0
        %1881 = vmatprep.subr.mxu0 0.0
        %1882 = vmatpush1.msra.mxu0 0.0
        %1883 = vmatprep.subr.mxu0 0.0
        %1884 = vmatpush1.msra.mxu0 0.0
        %1885 = vmatprep.subr.mxu0 0.0
        %1886 = vmatpush1.msra.mxu0 0.0
        %1887 = vmatprep.subr.mxu0 0.0
        %1888 = vmatpush1.msra.mxu0 0.0
        %1889 = vmatprep.subr.mxu0 0.0
        %1890 = vmatpush1.msra.mxu0 0.0
        %1891 = vmatprep.subr.mxu0 0.0
        %1892 = vmatpush1.msra.mxu0 0.0
        %1893 = vmatprep.subr.mxu0 0.0
        %1894 = vmatpush1.msra.mxu0 0.0
        %1895 = vmatprep.mubr.f32.mxu0 0.0
        %1896 = vmatmul.mubr.f32.gmra.mrb[0].mxu0 %v1829
        %v1897 = vpop.f32.mrb[0].mxu0
        %v1898 = vadd.f32 %v1826, %v1897
        %v1899 = vpop.f32.mrb[0].mxu0
        %v1900 = vadd.f32 %v1826, %v1899
        %1901 = vdwg.mxu0
        %v1902 = vsub.f32 0.0, %v1898
        %v1903 = vsub.f32 0.0, %v1900
        %v1904 = vmul.f32 %v1902, 1.442695
        %v1905 = vpow.pop %v1904
        %v1906 = vmul.f32 %v1903, 1.442695
        %v1907 = vpow.pop %v1906
        %v1908 = vadd.f32 %v1905, 1.0
        %v1909 = vadd.f32 %v1907, 1.0
        %v1910 = vrcp.pop %v1908
        %v1911 = vmul.f32 1.0, %v1910
        %v1912 = vrcp.pop %v1909
        %v1913 = vmul.f32 1.0, %v1912
        %v1916 = vcombine.low %v1911, %v1913
        %1918 = vst [vmem:[%s286] sm:$0xff] %v1916
        %s1919 = sand.u32 %s182, 1
        %s1920 = scalar_lea.sflag [#allocation6], %s1919
        %s1921 = sand.u32 %s182, 1
        %s1922 = smul.addr %s1921, 8
        %s1923 = scalar_lea.vmem [#allocation7], %s1922
        // Predicated region
        $region53: #{tpu_custom_call.1} parent=47 // pred_check
          %p1924 = pneg %p192
        $region54: #{tpu_custom_call.1} parent=47 // pred_check_branch
          %1926 = sbr.rel (%p1924) target = $region56
        $region55: #{tpu_custom_call.1} parent=47 // pred_region
          %s1928 = ssub.s32 128, 128
          %1929 = vsyncadd %s1920, %s1928
          %s1930 = smul.addr %s22, 2
          %s1931 = smul.addr %s1930, 64
          %s1932 = scalar_lea.hbm %s7, %s1931
          %s1934 = sshll.u32 %s1923, 4
          %s1935 = int_to_ptr.vmem [resolvable:$true] %s1934
          %1937 = dma.vmem_to_hbm [thread:$0]  %s1935, 128, %s1932, %s1920
        $region56: #{tpu_custom_call.1} parent=47 // pred_fallthru
          _
      $region48: #{tpu_custom_call.1} parent=5 // pred_fallthru
        _
      %p1938 = scmp.le.s32.totalorder 2, %s17
      // Predicated region
      $region57: #{tpu_custom_call.1} parent=5 // pred_check
        %p1939 = pneg %p1938
      $region58: #{tpu_custom_call.1} parent=5 // pred_check_branch
        %1941 = sbr.rel (%p1939) target = $region60
      $region59: #{tpu_custom_call.1} parent=5 // pred_region
        %s1942 = ssub.s32 %s17, 2
        // Predicated region
        $region61: #{tpu_custom_call.1} parent=59 // pred_check
          %p1943 = pneg %p198
        $region62: #{tpu_custom_call.1} parent=59 // pred_check_branch
          %1945 = sbr.rel (%p1943) target = $region64
        $region63: #{tpu_custom_call.1} parent=59 // pred_region
          %s1946 = sand.u32 %s183, 1
          %s1947 = scalar_lea.sflag [#allocation6], %s1946
          %s1948 = sand.u32 %s183, 1
          %s1949 = smul.addr %s1948, 8
          %s1950 = scalar_lea.vmem [#allocation7], %s1949
          %1951 = dma.done %s1947, 128
        $region64: #{tpu_custom_call.1} parent=59 // pred_fallthru
          _
      $region60: #{tpu_custom_call.1} parent=5 // pred_fallthru
        _
    $region6: #{tpu_custom_call.1} parent=1 // loop_footer
      %s21 = sadd.s32 1, %s17
    $region7: #{tpu_custom_call.1} parent=1 // loop_footer_branch
      %16 = sbr.rel target = $region3
    $region8: #{tpu_custom_call.1} parent=1 // loop_exit
      _
    %1952 = vsyncpa [#allocation5], 1
    %s1953 = scalar_lea.sflag [#allocation5], 1
    %1954 = vsyncpa %s1953, 1
    %1955 = vsyncpa [#allocation6], 1
    %s1956 = scalar_lea.sflag [#allocation6], 1
    %1957 = vsyncpa %s1956, 1

</llo_original>
